<compile_context>
chip_gen: v6e
topology: v6e:2x2x1
jax: 0.10.0
libtpu: 0.0.40
codegen_flags: <defaults>
</compile_context>

<pallas_src>
import jax
import jax.numpy as jnp
from jax.experimental import pallas as pl
from jax.experimental.pallas import tpu as pltpu

D = 5
W_HID = 200          # logical hidden width (matches the PyTorch module)
SKIPS = (2,)


def _round_up(n, m):
    return ((n + m - 1) // m) * m


# ----------------------------------------------------------------------------
# Kernel: 5 dense+ReLU layers + output layer, all on (bt, 256) bf16 tiles.
# The skip connection is pre-folded into the weights (see prepare_params).
# ----------------------------------------------------------------------------
def mlp_kernel(x_ref,
               w0, b0, w1, b1, w2, b2, w3, b3, w4, b4, wo, bo,
               out_ref):
    # Cast x0 once at entry; activations stay bf16 between layers.
    h = x_ref[...].astype(w0.dtype)

    def dense_relu(h, w_ref, b_ref):
        # bf16 operands -> MXU, f32 accumulate, f32 bias + ReLU, one bf16 cast.
        y = jnp.dot(h, w_ref[...], preferred_element_type=jnp.float32)
        return jnp.maximum(y + b_ref[...], 0.0).astype(h.dtype)

    h = dense_relu(h, w0, b0)   # layer 0 (+/-x0 copied into spare carry lanes)
    h = dense_relu(h, w1, b1)   # layer 1 (carry lanes pass through identity)
    h = dense_relu(h, w2, b2)   # layer 2 (carry lanes pass through identity)
    h = dense_relu(h, w3, b3)   # layer 3: skip folded -> h@W3b + x0@W3a via carries
    h = dense_relu(h, w4, b4)   # layer 4

    out = jnp.dot(h, wo[...], preferred_element_type=jnp.float32) + bo[...]
    out_ref[...] = out.astype(out_ref.dtype)


# ----------------------------------------------------------------------------
# Parameter init (matches nn.Linear shapes; weights stored transposed [in, out])
# ----------------------------------------------------------------------------
def init_params(key, input_dim, output_dim, D=D, W=W_HID, skips=SKIPS):
    shapes = [(input_dim, W)]
    for i in range(D - 1):
        fan_in = W if i not in skips else W + input_dim
        shapes.append((fan_in, W))
    shapes.append((W, output_dim))
    params = []
    for (fi, fo) in shapes:
        key, k_w, k_b = jax.random.split(key, 3)
        bound = 1.0 / (fi ** 0.5)
        w = jax.random.uniform(k_w, (fi, fo), jnp.float32, -bound, bound)
        b = jax.random.uniform(k_b, (1, fo), jnp.float32, -bound, bound)
        params += [w, b]
    return params


def prepare_params(params, input_dim, compute_dtype=jnp.bfloat16):
    """Pad hidden width to a 128-multiple, fold the skip into spare carry lanes,
    pad the output to 128 lanes, cast weights to bf16 (biases stay f32)."""
    w0, b0, w1, b1, w2, b2, w3, b3, w4, b4, wo, bo = params
    W = w0.shape[1]                                     # 200
    w_pad = _round_up(W + 2 * input_dim, 128)           # 256 for input_dim<=28
    out_pad = _round_up(wo.shape[1], 128)
    c_pos = W                                           # carry lanes for +x0
    c_neg = W + input_dim                               # carry lanes for -x0

    def padw(w, rows, cols):
        return jnp.pad(w, ((0, rows - w.shape[0]), (0, cols - w.shape[1])))

    def padb(b, cols):
        return jnp.pad(b, ((0, 0), (0, cols - b.shape[1]))).astype(jnp.float32)

    eye = jnp.eye(input_dim, dtype=w0.dtype)

    # Layer 0: real weights + carry columns copying +x0 / -x0 (zero bias -> exact).
    w0p = padw(w0, input_dim, w_pad)
    w0p = w0p.at[:, c_pos:c_pos + input_dim].set(eye)
    w0p = w0p.at[:, c_neg:c_neg + input_dim].set(-eye)

    # Layers 1, 2: real weights + identity pass-through on the (non-negative) carries.
    def passthrough(w):
        wp = padw(w, w_pad, w_pad)
        idx = jnp.arange(c_pos, c_pos + 2 * input_dim)
        return wp.at[idx, idx].set(1.0)

    w1p = passthrough(w1)
    w2p = passthrough(w2)

    # Layer 3 (skip): rows 0..W-1 multiply h (w3[input_dim:]); carry rows hold
    # +/-w3[:input_dim] so relu(x0) - relu(-x0) = x0 reconstructs x0 @ W3a.
    w3p = padw(w3[input_dim:], w_pad, w_pad)
    w3p = w3p.at[c_pos:c_pos + input_dim, :W].set(w3[:input_dim])
    w3p = w3p.at[c_neg:c_neg + input_dim, :W].set(-w3[:input_dim])

    w4p = padw(w4, w_pad, w_pad)
    wop = padw(wo, w_pad, out_pad)

    cd = compute_dtype
    prepped = (
        w0p.astype(cd), padb(b0, w_pad),
        w1p.astype(cd), padb(b1, w_pad),
        w2p.astype(cd), padb(b2, w_pad),
        w3p.astype(cd), padb(b3, w_pad),
        w4p.astype(cd), padb(b4, w_pad),
        wop.astype(cd), padb(bo, out_pad),
    )
    return prepped, w_pad, out_pad


# ----------------------------------------------------------------------------
# Wrapper
# ----------------------------------------------------------------------------
def _choose_bt(n, block_rows):
    """Batch tile: multiple of 256, capped at block_rows, and yielding >= 2 grid
    steps whenever the batch spans more than one 256-row chunk (v7x has 2 TCs)."""
    chunks = _round_up(max(n, 1), 256) // 256
    max_chunks = max(block_rows // 256, 1)
    bt_chunks = 1 if chunks <= 1 else min(max_chunks, (chunks + 1) // 2)
    return bt_chunks * 256


def neural_network_forward(x, params, output_dim, *, block_rows=4096,
                           compute_dtype=jnp.bfloat16):
    n, in_dim = x.shape
    prepped, w_pad, out_pad = prepare_params(params, in_dim, compute_dtype)

    bt = _choose_bt(n, block_rows)
    n_pad = _round_up(n, bt)
    x_p = jnp.pad(x, ((0, n_pad - n), (0, 0))) if n_pad != n else x

    grid = (n_pad // bt,)
    in_specs = [pl.BlockSpec((bt, in_dim), lambda i: (i, 0))]
    # weights / biases: full-array blocks, constant index_map -> VMEM-resident
    in_specs += [pl.BlockSpec(a.shape, lambda i, nd=a.ndim: (0,) * nd)
                 for a in prepped]
    out_spec = pl.BlockSpec((bt, out_pad), lambda i: (i, 0))   # lane-dense output

    flops = 2 * n_pad * (in_dim * w_pad            # layer 0
                         + 4 * w_pad * w_pad       # layers 1-4 (skip folded)
                         + w_pad * out_pad)        # output layer
    bytes_accessed = (x_p.size * x_p.dtype.itemsize
                      + sum(int(a.size) * a.dtype.itemsize for a in prepped)
                      + n_pad * out_pad * x.dtype.itemsize)

    out = pl.pallas_call(
        mlp_kernel,
        grid=grid,
        in_specs=in_specs,
        out_specs=out_spec,
        out_shape=jax.ShapeDtypeStruct((n_pad, out_pad), x.dtype),
        compiler_params=pltpu.CompilerParams(
            dimension_semantics=("parallel",),
            vmem_limit_bytes=48 * 1024 * 1024,     # fits v7x's 64 MiB physical VMEM
        ),
        cost_estimate=pl.CostEstimate(flops=flops, transcendentals=0,
                                      bytes_accessed=bytes_accessed),
    )(x_p, *prepped)

    return out[:n, :output_dim]


# ----------------------------------------------------------------------------
# Pure-JAX reference (f32) for a sanity check
# ----------------------------------------------------------------------------
def _reference_forward(x, params):
    w0, b0, w1, b1, w2, b2, w3, b3, w4, b4, wo, bo = params
    h = jax.nn.relu(x @ w0 + b0)
    h = jax.nn.relu(h @ w1 + b1)
    h = jax.nn.relu(h @ w2 + b2)
    h = jnp.concatenate([x, h], axis=-1)
    h = jax.nn.relu(h @ w3 + b3)
    h = jax.nn.relu(h @ w4 + b4)
    return h @ wo + bo


if __name__ == "__main__":
    key = jax.random.PRNGKey(0)
    input_dim, output_dim = 8, 4

    k_params, k_x1, k_x2 = jax.random.split(key, 3)
    params = init_params(k_params, input_dim, output_dim)

    # batch=20 -> single 256-row tile; batch=300 -> 2 grid steps (exercises tiling).
    for batch, kx in ((20, k_x1), (300, k_x2)):
        x = jax.random.normal(kx, (batch, input_dim), jnp.float32)
        out = neural_network_forward(x, params, output_dim)
        jax.block_until_ready(out)

        assert out.shape == (batch, output_dim)
        assert bool(jnp.all(jnp.isfinite(out)))

        ref = _reference_forward(x, params)
        max_err = float(jnp.max(jnp.abs(out - ref)))
        # bf16 weights/activations are an intentional precision trade-off.
        assert max_err < 1e-1, f"batch={batch}: max abs error vs f32 ref: {max_err}"

    print("KERNEL_OK")
</pallas_src>

<mosaic_0001>
module attributes {stable_mosaic.version = 11 : i64} {
  func.func @mlp_kernel(%arg0: i32, %arg1: memref<256x8xf32, #tpu.memory_space<vmem>>, %arg2: memref<8x256xbf16, #tpu.memory_space<vmem>>, %arg3: memref<1x256xf32, #tpu.memory_space<vmem>>, %arg4: memref<256x256xbf16, #tpu.memory_space<vmem>>, %arg5: memref<1x256xf32, #tpu.memory_space<vmem>>, %arg6: memref<256x256xbf16, #tpu.memory_space<vmem>>, %arg7: memref<1x256xf32, #tpu.memory_space<vmem>>, %arg8: memref<256x256xbf16, #tpu.memory_space<vmem>>, %arg9: memref<1x256xf32, #tpu.memory_space<vmem>>, %arg10: memref<256x256xbf16, #tpu.memory_space<vmem>>, %arg11: memref<1x256xf32, #tpu.memory_space<vmem>>, %arg12: memref<256x128xbf16, #tpu.memory_space<vmem>>, %arg13: memref<1x128xf32, #tpu.memory_space<vmem>>, %arg14: memref<256x128xf32, #tpu.memory_space<vmem>>) attributes {dimension_semantics = [#tpu.dimension_semantics<parallel>], iteration_bounds = array<i64: 1>, scalar_prefetch = 0 : i64, scratch_operands = 0 : i64, tpu.core_type = #tpu.core_type<tc>, window_params = [{transform_indices = @transform_0, window_bounds = array<i64: 256, 8>}, {pipeline_mode = #tpu.pipeline_mode<synchronous>, transform_indices = @transform_1, window_bounds = array<i64: 8, 256>}, {pipeline_mode = #tpu.pipeline_mode<synchronous>, transform_indices = @transform_2, window_bounds = array<i64: 1, 256>}, {pipeline_mode = #tpu.pipeline_mode<synchronous>, transform_indices = @transform_3, window_bounds = array<i64: 256, 256>}, {pipeline_mode = #tpu.pipeline_mode<synchronous>, transform_indices = @transform_4, window_bounds = array<i64: 1, 256>}, {pipeline_mode = #tpu.pipeline_mode<synchronous>, transform_indices = @transform_5, window_bounds = array<i64: 256, 256>}, {pipeline_mode = #tpu.pipeline_mode<synchronous>, transform_indices = @transform_6, window_bounds = array<i64: 1, 256>}, {pipeline_mode = #tpu.pipeline_mode<synchronous>, transform_indices = @transform_7, window_bounds = array<i64: 256, 256>}, {pipeline_mode = #tpu.pipeline_mode<synchronous>, transform_indices = @transform_8, window_bounds = array<i64: 1, 256>}, {pipeline_mode = #tpu.pipeline_mode<synchronous>, transform_indices = @transform_9, window_bounds = array<i64: 256, 256>}, {pipeline_mode = #tpu.pipeline_mode<synchronous>, transform_indices = @transform_10, window_bounds = array<i64: 1, 256>}, {pipeline_mode = #tpu.pipeline_mode<synchronous>, transform_indices = @transform_11, window_bounds = array<i64: 256, 128>}, {pipeline_mode = #tpu.pipeline_mode<synchronous>, transform_indices = @transform_12, window_bounds = array<i64: 1, 128>}, {transform_indices = @transform_13, window_bounds = array<i64: 256, 128>}]} {
    %c0 = arith.constant 0 : index
    %c0_0 = arith.constant 0 : index
    %0 = vector.load %arg1[%c0, %c0_0] : memref<256x8xf32, #tpu.memory_space<vmem>>, vector<256x8xf32>
    %1 = arith.truncf %0 : vector<256x8xf32> to vector<256x8xbf16>
    %c0_1 = arith.constant 0 : index
    %c0_2 = arith.constant 0 : index
    %2 = vector.load %arg2[%c0_1, %c0_2] : memref<8x256xbf16, #tpu.memory_space<vmem>>, vector<8x256xbf16>
    %cst = arith.constant dense<0.000000e+00> : vector<256x256xf32>
    %3 = tpu.matmul %1, %2, %cst {dimension_numbers = #tpu.dot_dimension_numbers<[1], [0], [0], [1], [0, 0, 1, 1], [], []>} : vector<256x8xbf16>, vector<8x256xbf16>, vector<256x256xf32> -> vector<256x256xf32>
    %c0_3 = arith.constant 0 : index
    %c0_4 = arith.constant 0 : index
    %4 = vector.load %arg3[%c0_3, %c0_4] : memref<1x256xf32, #tpu.memory_space<vmem>>, vector<1x256xf32>
    %5 = vector.broadcast %4 : vector<1x256xf32> to vector<256x256xf32>
    %6 = arith.addf %3, %5 : vector<256x256xf32>
    %cst_5 = arith.constant 0.000000e+00 : f32
    %7 = vector.broadcast %cst_5 : f32 to vector<256x256xf32>
    %8 = arith.maximumf %6, %7 : vector<256x256xf32>
    %9 = arith.truncf %8 : vector<256x256xf32> to vector<256x256xbf16>
    %c0_6 = arith.constant 0 : index
    %c0_7 = arith.constant 0 : index
    %10 = vector.load %arg4[%c0_6, %c0_7] : memref<256x256xbf16, #tpu.memory_space<vmem>>, vector<256x256xbf16>
    %cst_8 = arith.constant dense<0.000000e+00> : vector<256x256xf32>
    %11 = tpu.matmul %9, %10, %cst_8 {dimension_numbers = #tpu.dot_dimension_numbers<[1], [0], [0], [1], [0, 0, 1, 1], [], []>} : vector<256x256xbf16>, vector<256x256xbf16>, vector<256x256xf32> -> vector<256x256xf32>
    %c0_9 = arith.constant 0 : index
    %c0_10 = arith.constant 0 : index
    %12 = vector.load %arg5[%c0_9, %c0_10] : memref<1x256xf32, #tpu.memory_space<vmem>>, vector<1x256xf32>
    %13 = vector.broadcast %12 : vector<1x256xf32> to vector<256x256xf32>
    %14 = arith.addf %11, %13 : vector<256x256xf32>
    %cst_11 = arith.constant 0.000000e+00 : f32
    %15 = vector.broadcast %cst_11 : f32 to vector<256x256xf32>
    %16 = arith.maximumf %14, %15 : vector<256x256xf32>
    %17 = arith.truncf %16 : vector<256x256xf32> to vector<256x256xbf16>
    %c0_12 = arith.constant 0 : index
    %c0_13 = arith.constant 0 : index
    %18 = vector.load %arg6[%c0_12, %c0_13] : memref<256x256xbf16, #tpu.memory_space<vmem>>, vector<256x256xbf16>
    %cst_14 = arith.constant dense<0.000000e+00> : vector<256x256xf32>
    %19 = tpu.matmul %17, %18, %cst_14 {dimension_numbers = #tpu.dot_dimension_numbers<[1], [0], [0], [1], [0, 0, 1, 1], [], []>} : vector<256x256xbf16>, vector<256x256xbf16>, vector<256x256xf32> -> vector<256x256xf32>
    %c0_15 = arith.constant 0 : index
    %c0_16 = arith.constant 0 : index
    %20 = vector.load %arg7[%c0_15, %c0_16] : memref<1x256xf32, #tpu.memory_space<vmem>>, vector<1x256xf32>
    %21 = vector.broadcast %20 : vector<1x256xf32> to vector<256x256xf32>
    %22 = arith.addf %19, %21 : vector<256x256xf32>
    %cst_17 = arith.constant 0.000000e+00 : f32
    %23 = vector.broadcast %cst_17 : f32 to vector<256x256xf32>
    %24 = arith.maximumf %22, %23 : vector<256x256xf32>
    %25 = arith.truncf %24 : vector<256x256xf32> to vector<256x256xbf16>
    %c0_18 = arith.constant 0 : index
    %c0_19 = arith.constant 0 : index
    %26 = vector.load %arg8[%c0_18, %c0_19] : memref<256x256xbf16, #tpu.memory_space<vmem>>, vector<256x256xbf16>
    %cst_20 = arith.constant dense<0.000000e+00> : vector<256x256xf32>
    %27 = tpu.matmul %25, %26, %cst_20 {dimension_numbers = #tpu.dot_dimension_numbers<[1], [0], [0], [1], [0, 0, 1, 1], [], []>} : vector<256x256xbf16>, vector<256x256xbf16>, vector<256x256xf32> -> vector<256x256xf32>
    %c0_21 = arith.constant 0 : index
    %c0_22 = arith.constant 0 : index
    %28 = vector.load %arg9[%c0_21, %c0_22] : memref<1x256xf32, #tpu.memory_space<vmem>>, vector<1x256xf32>
    %29 = vector.broadcast %28 : vector<1x256xf32> to vector<256x256xf32>
    %30 = arith.addf %27, %29 : vector<256x256xf32>
    %cst_23 = arith.constant 0.000000e+00 : f32
    %31 = vector.broadcast %cst_23 : f32 to vector<256x256xf32>
    %32 = arith.maximumf %30, %31 : vector<256x256xf32>
    %33 = arith.truncf %32 : vector<256x256xf32> to vector<256x256xbf16>
    %c0_24 = arith.constant 0 : index
    %c0_25 = arith.constant 0 : index
    %34 = vector.load %arg10[%c0_24, %c0_25] : memref<256x256xbf16, #tpu.memory_space<vmem>>, vector<256x256xbf16>
    %cst_26 = arith.constant dense<0.000000e+00> : vector<256x256xf32>
    %35 = tpu.matmul %33, %34, %cst_26 {dimension_numbers = #tpu.dot_dimension_numbers<[1], [0], [0], [1], [0, 0, 1, 1], [], []>} : vector<256x256xbf16>, vector<256x256xbf16>, vector<256x256xf32> -> vector<256x256xf32>
    %c0_27 = arith.constant 0 : index
    %c0_28 = arith.constant 0 : index
    %36 = vector.load %arg11[%c0_27, %c0_28] : memref<1x256xf32, #tpu.memory_space<vmem>>, vector<1x256xf32>
    %37 = vector.broadcast %36 : vector<1x256xf32> to vector<256x256xf32>
    %38 = arith.addf %35, %37 : vector<256x256xf32>
    %cst_29 = arith.constant 0.000000e+00 : f32
    %39 = vector.broadcast %cst_29 : f32 to vector<256x256xf32>
    %40 = arith.maximumf %38, %39 : vector<256x256xf32>
    %41 = arith.truncf %40 : vector<256x256xf32> to vector<256x256xbf16>
    %c0_30 = arith.constant 0 : index
    %c0_31 = arith.constant 0 : index
    %42 = vector.load %arg12[%c0_30, %c0_31] : memref<256x128xbf16, #tpu.memory_space<vmem>>, vector<256x128xbf16>
    %cst_32 = arith.constant dense<0.000000e+00> : vector<256x128xf32>
    %43 = tpu.matmul %41, %42, %cst_32 {dimension_numbers = #tpu.dot_dimension_numbers<[1], [0], [0], [1], [0, 0, 1, 1], [], []>} : vector<256x256xbf16>, vector<256x128xbf16>, vector<256x128xf32> -> vector<256x128xf32>
    %c0_33 = arith.constant 0 : index
    %c0_34 = arith.constant 0 : index
    %44 = vector.load %arg13[%c0_33, %c0_34] : memref<1x128xf32, #tpu.memory_space<vmem>>, vector<1x128xf32>
    %45 = vector.broadcast %44 : vector<1x128xf32> to vector<256x128xf32>
    %46 = arith.addf %43, %45 : vector<256x128xf32>
    %c0_35 = arith.constant 0 : index
    %c0_36 = arith.constant 0 : index
    %47 = vector.load %arg14[%c0_35, %c0_36] : memref<256x128xf32, #tpu.memory_space<vmem>>, vector<256x128xf32>
    tpu.vector_store %arg14[%c0_35, %c0_36], %46 {strides = array<i32>} : memref<256x128xf32, #tpu.memory_space<vmem>>, vector<256x128xf32>,
    return
  }
  func.func @transform_0(%arg0: i32) -> (i32, i32) {
    %c0_i32 = arith.constant 0 : i32
    %c0_i32_0 = arith.constant 0 : i32
    return %arg0, %c0_i32 : i32, i32
  }
  func.func @transform_1(%arg0: i32) -> (i32, i32) {
    %c0_i32 = arith.constant 0 : i32
    %c0_i32_0 = arith.constant 0 : i32
    %c0_i32_1 = arith.constant 0 : i32
    return %c0_i32, %c0_i32_0 : i32, i32
  }
  func.func @transform_2(%arg0: i32) -> (i32, i32) {
    %c0_i32 = arith.constant 0 : i32
    %c0_i32_0 = arith.constant 0 : i32
    %c0_i32_1 = arith.constant 0 : i32
    return %c0_i32, %c0_i32_0 : i32, i32
  }
  func.func @transform_3(%arg0: i32) -> (i32, i32) {
    %c0_i32 = arith.constant 0 : i32
    %c0_i32_0 = arith.constant 0 : i32
    %c0_i32_1 = arith.constant 0 : i32
    return %c0_i32, %c0_i32_0 : i32, i32
  }
  func.func @transform_4(%arg0: i32) -> (i32, i32) {
    %c0_i32 = arith.constant 0 : i32
    %c0_i32_0 = arith.constant 0 : i32
    %c0_i32_1 = arith.constant 0 : i32
    return %c0_i32, %c0_i32_0 : i32, i32
  }
  func.func @transform_5(%arg0: i32) -> (i32, i32) {
    %c0_i32 = arith.constant 0 : i32
    %c0_i32_0 = arith.constant 0 : i32
    %c0_i32_1 = arith.constant 0 : i32
    return %c0_i32, %c0_i32_0 : i32, i32
  }
  func.func @transform_6(%arg0: i32) -> (i32, i32) {
    %c0_i32 = arith.constant 0 : i32
    %c0_i32_0 = arith.constant 0 : i32
    %c0_i32_1 = arith.constant 0 : i32
    return %c0_i32, %c0_i32_0 : i32, i32
  }
  func.func @transform_7(%arg0: i32) -> (i32, i32) {
    %c0_i32 = arith.constant 0 : i32
    %c0_i32_0 = arith.constant 0 : i32
    %c0_i32_1 = arith.constant 0 : i32
    return %c0_i32, %c0_i32_0 : i32, i32
  }
  func.func @transform_8(%arg0: i32) -> (i32, i32) {
    %c0_i32 = arith.constant 0 : i32
    %c0_i32_0 = arith.constant 0 : i32
    %c0_i32_1 = arith.constant 0 : i32
    return %c0_i32, %c0_i32_0 : i32, i32
  }
  func.func @transform_9(%arg0: i32) -> (i32, i32) {
    %c0_i32 = arith.constant 0 : i32
    %c0_i32_0 = arith.constant 0 : i32
    %c0_i32_1 = arith.constant 0 : i32
    return %c0_i32, %c0_i32_0 : i32, i32
  }
  func.func @transform_10(%arg0: i32) -> (i32, i32) {
    %c0_i32 = arith.constant 0 : i32
    %c0_i32_0 = arith.constant 0 : i32
    %c0_i32_1 = arith.constant 0 : i32
    return %c0_i32, %c0_i32_0 : i32, i32
  }
  func.func @transform_11(%arg0: i32) -> (i32, i32) {
    %c0_i32 = arith.constant 0 : i32
    %c0_i32_0 = arith.constant 0 : i32
    %c0_i32_1 = arith.constant 0 : i32
    return %c0_i32, %c0_i32_0 : i32, i32
  }
  func.func @transform_12(%arg0: i32) -> (i32, i32) {
    %c0_i32 = arith.constant 0 : i32
    %c0_i32_0 = arith.constant 0 : i32
    %c0_i32_1 = arith.constant 0 : i32
    return %c0_i32, %c0_i32_0 : i32, i32
  }
  func.func @transform_13(%arg0: i32) -> (i32, i32) {
    %c0_i32 = arith.constant 0 : i32
    %c0_i32_0 = arith.constant 0 : i32
    return %arg0, %c0_i32 : i32, i32
  }
}

</mosaic_0001>

<llo_original>
// kernel: tpu_custom_call.1
$region0: #{tpu_custom_call.1}
  #allocation0 [shape = 'u32[]', space=smem, size = 0x4, offset = 0x4, fixed_abs, tag = 'smem constant byte address 0x4 - core index']
  #allocation1 [shape = 'u32[144,128]{1,0:T(1,128)}', space=vmem, size = 0x12000, scoped, tag = 'internal scratch']
  %s0 = inlined_call_operand.vmem [shape: f32[256,8], index: 0, kind: input, shape index: {}]
  %s1 = inlined_call_operand.vmem [shape: bf16[8,256], index: 1, kind: input, shape index: {}]
  %s2 = inlined_call_operand.vmem [shape: f32[1,256], index: 2, kind: input, shape index: {}]
  %s3 = inlined_call_operand.vmem [shape: bf16[256,256], index: 3, kind: input, shape index: {}]
  %s4 = inlined_call_operand.vmem [shape: f32[1,256], index: 4, kind: input, shape index: {}]
  %s5 = inlined_call_operand.hbm [shape: bf16[256,256], index: 5, kind: input, shape index: {}]
  %s6 = inlined_call_operand.vmem [shape: f32[1,256], index: 6, kind: input, shape index: {}]
  %s7 = inlined_call_operand.hbm [shape: bf16[256,256], index: 7, kind: input, shape index: {}]
  %s8 = inlined_call_operand.vmem [shape: f32[1,256], index: 8, kind: input, shape index: {}]
  %s9 = inlined_call_operand.hbm [shape: bf16[256,256], index: 9, kind: input, shape index: {}]
  %s10 = inlined_call_operand.vmem [shape: f32[1,256], index: 10, kind: input, shape index: {}]
  %s11 = inlined_call_operand.hbm [shape: bf16[256,128], index: 11, kind: input, shape index: {}]
  %s12 = inlined_call_operand.vmem [shape: f32[1,128], index: 12, kind: input, shape index: {}]
  %s13 = inlined_call_operand.hbm [shape: f32[256,128], index: 13, kind: output, shape index: {}]
  %s14 = sld [smem:[#allocation0]]
  $region78: #{tpu_custom_call.1} parent=0
    _
  %s16 = ssub.s32 1, %s14
  %s17 = scalar_select 0, %s16, %s14
  $region1: #{tpu_custom_call.1} parent=0
    #allocation2 [shape = 'u8[131072]{0}', space=vmem, size = 0x20000, scoped, tag = 'input window, operand 5, single buffered']
    #allocation3 [shape = 's32[1]{0}', space=sflag, size = 0x4, scoped, tag = 'scoped memory for tpu_custom_call.1']
    #allocation4 [shape = 's32[1]{0}', space=sflag, size = 0x4, scoped, tag = 'scoped memory for tpu_custom_call.1']
    #allocation5 [shape = 'u8[131072]{0}', space=vmem, size = 0x20000, scoped, tag = 'input window, operand 7, single buffered']
    #allocation6 [shape = 's32[1]{0}', space=sflag, size = 0x4, scoped, tag = 'scoped memory for tpu_custom_call.1']
    #allocation7 [shape = 'u8[131072]{0}', space=vmem, size = 0x20000, scoped, tag = 'input window, operand 9, single buffered']
    #allocation8 [shape = 'u8[65536]{0}', space=vmem, size = 0x10000, scoped, tag = 'input window, operand 11, single buffered']
    #allocation9 [shape = 's32[1]{0}', space=sflag, size = 0x4, scoped, tag = 'scoped memory for tpu_custom_call.1']
    #allocation10 [shape = 'u8[131072]{0}', space=vmem, size = 0x20000, scoped, tag = 'output window, operand 0, single buffered']
    %18 = vsyncpa [#allocation3], 0
    %19 = vsyncpa [#allocation6], 0
    %20 = vsyncpa [#allocation9], 0
    %21 = vsyncpa [#allocation4], 0
    // Predicated region
    $region2: #{tpu_custom_call.1} parent=1 // pred_check
      _
    $region3: #{tpu_custom_call.1} parent=1 // pred_check_branch
      %23 = sbr.rel (0) target = $region5
    $region4: #{tpu_custom_call.1} parent=1 // pred_region
      _
    $region5: #{tpu_custom_call.1} parent=1 // pred_fallthru
      _
    // Predicated region
    $region6: #{tpu_custom_call.1} parent=1 // pred_check
      _
    $region7: #{tpu_custom_call.1} parent=1 // pred_check_branch
      %25 = sbr.rel (0) target = $region9
    $region8: #{tpu_custom_call.1} parent=1 // pred_region
      _
    $region9: #{tpu_custom_call.1} parent=1 // pred_fallthru
      _
    // Predicated region
    $region10: #{tpu_custom_call.1} parent=1 // pred_check
      _
    $region11: #{tpu_custom_call.1} parent=1 // pred_check_branch
      %27 = sbr.rel (0) target = $region13
    $region12: #{tpu_custom_call.1} parent=1 // pred_region
      _
    $region13: #{tpu_custom_call.1} parent=1 // pred_fallthru
      _
    // Predicated region
    $region14: #{tpu_custom_call.1} parent=1 // pred_check
      _
    $region15: #{tpu_custom_call.1} parent=1 // pred_check_branch
      %29 = sbr.rel (0) target = $region17
    $region16: #{tpu_custom_call.1} parent=1 // pred_region
      _
    $region17: #{tpu_custom_call.1} parent=1 // pred_fallthru
      _
    // Predicated region
    $region18: #{tpu_custom_call.1} parent=1 // pred_check
      _
    $region19: #{tpu_custom_call.1} parent=1 // pred_check_branch
      %31 = sbr.rel (0) target = $region21
    $region20: #{tpu_custom_call.1} parent=1 // pred_region
      _
    $region21: #{tpu_custom_call.1} parent=1 // pred_fallthru
      _
    // Predicated region
    $region22: #{tpu_custom_call.1} parent=1 // pred_check
      _
    $region23: #{tpu_custom_call.1} parent=1 // pred_check_branch
      %33 = sbr.rel (0) target = $region25
    $region24: #{tpu_custom_call.1} parent=1 // pred_region
      %s35 = ssub.s32 4096, 4096
      %36 = vsyncadd [#allocation3], %s35
      %s37 = sshll.u32 [#allocation2], 4
      %s38 = int_to_ptr.vmem [resolvable:$true] %s37
      %43 = dma.hbm_to_vmem [thread:$0]  %s5, 4096, %s38, [#allocation3], 128, 128, 8
    $region25: #{tpu_custom_call.1} parent=1 // pred_fallthru
      _
    // Predicated region
    $region26: #{tpu_custom_call.1} parent=1 // pred_check
      _
    $region27: #{tpu_custom_call.1} parent=1 // pred_check_branch
      %45 = sbr.rel (0) target = $region29
    $region28: #{tpu_custom_call.1} parent=1 // pred_region
      _
    $region29: #{tpu_custom_call.1} parent=1 // pred_fallthru
      _
    // Predicated region
    $region30: #{tpu_custom_call.1} parent=1 // pred_check
      _
    $region31: #{tpu_custom_call.1} parent=1 // pred_check_branch
      %47 = sbr.rel (0) target = $region33
    $region32: #{tpu_custom_call.1} parent=1 // pred_region
      %s49 = ssub.s32 4096, 4096
      %50 = vsyncadd [#allocation6], %s49
      %s51 = sshll.u32 [#allocation5], 4
      %s52 = int_to_ptr.vmem [resolvable:$true] %s51
      %57 = dma.hbm_to_vmem [thread:$0]  %s7, 4096, %s52, [#allocation6], 128, 128, 8
    $region33: #{tpu_custom_call.1} parent=1 // pred_fallthru
      _
    // Predicated region
    $region34: #{tpu_custom_call.1} parent=1 // pred_check
      _
    $region35: #{tpu_custom_call.1} parent=1 // pred_check_branch
      %59 = sbr.rel (0) target = $region37
    $region36: #{tpu_custom_call.1} parent=1 // pred_region
      _
    $region37: #{tpu_custom_call.1} parent=1 // pred_fallthru
      _
    // Predicated region
    $region38: #{tpu_custom_call.1} parent=1 // pred_check
      _
    $region39: #{tpu_custom_call.1} parent=1 // pred_check_branch
      %61 = sbr.rel (0) target = $region41
    $region40: #{tpu_custom_call.1} parent=1 // pred_region
      %s63 = ssub.s32 4096, 4096
      %64 = vsyncadd [#allocation6], %s63
      %s65 = sshll.u32 [#allocation7], 4
      %s66 = int_to_ptr.vmem [resolvable:$true] %s65
      %71 = dma.hbm_to_vmem [thread:$0]  %s9, 4096, %s66, [#allocation6], 128, 128, 8
    $region41: #{tpu_custom_call.1} parent=1 // pred_fallthru
      _
    // Predicated region
    $region42: #{tpu_custom_call.1} parent=1 // pred_check
      _
    $region43: #{tpu_custom_call.1} parent=1 // pred_check_branch
      %73 = sbr.rel (0) target = $region45
    $region44: #{tpu_custom_call.1} parent=1 // pred_region
      _
    $region45: #{tpu_custom_call.1} parent=1 // pred_fallthru
      _
    // Predicated region
    $region46: #{tpu_custom_call.1} parent=1 // pred_check
      _
    $region47: #{tpu_custom_call.1} parent=1 // pred_check_branch
      %75 = sbr.rel (0) target = $region49
    $region48: #{tpu_custom_call.1} parent=1 // pred_region
      %s77 = ssub.s32 2048, 2048
      %78 = vsyncadd [#allocation9], %s77
      %s79 = sshll.u32 [#allocation8], 4
      %s80 = int_to_ptr.vmem [resolvable:$true] %s79
      %85 = dma.hbm_to_vmem [thread:$0]  %s11, 2048, %s80, [#allocation9], 64, 64, 4
    $region49: #{tpu_custom_call.1} parent=1 // pred_fallthru
      _
    // Predicated region
    $region50: #{tpu_custom_call.1} parent=1 // pred_check
      _
    $region51: #{tpu_custom_call.1} parent=1 // pred_check_branch
      %87 = sbr.rel (0) target = $region53
    $region52: #{tpu_custom_call.1} parent=1 // pred_region
      _
    $region53: #{tpu_custom_call.1} parent=1 // pred_fallthru
      _
    // Predicated region
    $region54: #{tpu_custom_call.1} parent=1 // pred_check
      _
    $region55: #{tpu_custom_call.1} parent=1 // pred_check_branch
      %89 = sbr.rel (0) target = $region57
    $region56: #{tpu_custom_call.1} parent=1 // pred_region
      %90 = dma.done [#allocation3], 4096
    $region57: #{tpu_custom_call.1} parent=1 // pred_fallthru
      _
    // Predicated region
    $region58: #{tpu_custom_call.1} parent=1 // pred_check
      _
    $region59: #{tpu_custom_call.1} parent=1 // pred_check_branch
      %92 = sbr.rel (0) target = $region61
    $region60: #{tpu_custom_call.1} parent=1 // pred_region
      %93 = dma.done [#allocation6], 4096
    $region61: #{tpu_custom_call.1} parent=1 // pred_fallthru
      _
    // Predicated region
    $region62: #{tpu_custom_call.1} parent=1 // pred_check
      _
    $region63: #{tpu_custom_call.1} parent=1 // pred_check_branch
      %95 = sbr.rel (0) target = $region65
    $region64: #{tpu_custom_call.1} parent=1 // pred_region
      %96 = dma.done [#allocation6], 4096
    $region65: #{tpu_custom_call.1} parent=1 // pred_fallthru
      _
    // Predicated region
    $region66: #{tpu_custom_call.1} parent=1 // pred_check
      _
    $region67: #{tpu_custom_call.1} parent=1 // pred_check_branch
      %98 = sbr.rel (0) target = $region69
    $region68: #{tpu_custom_call.1} parent=1 // pred_region
      %99 = dma.done [#allocation9], 2048
    $region69: #{tpu_custom_call.1} parent=1 // pred_fallthru
      _
    %v101 = vld [vmem:[%s0] sm:$0xff]
    %v102 = vld [vmem:[%s0 + $0x8] sm:$0xff]
    %v103 = vld [vmem:[%s0 + $0x10] sm:$0xff]
    %v104 = vld [vmem:[%s0 + $0x18] sm:$0xff]
    %v105 = vld [vmem:[%s0 + $0x20] sm:$0xff]
    %v106 = vld [vmem:[%s0 + $0x28] sm:$0xff]
    %v107 = vld [vmem:[%s0 + $0x30] sm:$0xff]
    %v108 = vld [vmem:[%s0 + $0x38] sm:$0xff]
    %v109 = vld [vmem:[%s0 + $0x40] sm:$0xff]
    %v110 = vld [vmem:[%s0 + $0x48] sm:$0xff]
    %v111 = vld [vmem:[%s0 + $0x50] sm:$0xff]
    %v112 = vld [vmem:[%s0 + $0x58] sm:$0xff]
    %v113 = vld [vmem:[%s0 + $0x60] sm:$0xff]
    %v114 = vld [vmem:[%s0 + $0x68] sm:$0xff]
    %v115 = vld [vmem:[%s0 + $0x70] sm:$0xff]
    %v116 = vld [vmem:[%s0 + $0x78] sm:$0xff]
    %v117 = vld [vmem:[%s0 + $0x80] sm:$0xff]
    %v118 = vld [vmem:[%s0 + $0x88] sm:$0xff]
    %v119 = vld [vmem:[%s0 + $0x90] sm:$0xff]
    %v120 = vld [vmem:[%s0 + $0x98] sm:$0xff]
    %v121 = vld [vmem:[%s0 + $0xa0] sm:$0xff]
    %v122 = vld [vmem:[%s0 + $0xa8] sm:$0xff]
    %v123 = vld [vmem:[%s0 + $0xb0] sm:$0xff]
    %v124 = vld [vmem:[%s0 + $0xb8] sm:$0xff]
    %v125 = vld [vmem:[%s0 + $0xc0] sm:$0xff]
    %v126 = vld [vmem:[%s0 + $0xc8] sm:$0xff]
    %v127 = vld [vmem:[%s0 + $0xd0] sm:$0xff]
    %v128 = vld [vmem:[%s0 + $0xd8] sm:$0xff]
    %v129 = vld [vmem:[%s0 + $0xe0] sm:$0xff]
    %v130 = vld [vmem:[%s0 + $0xe8] sm:$0xff]
    %v131 = vld [vmem:[%s0 + $0xf0] sm:$0xff]
    %v132 = vld [vmem:[%s0 + $0xf8] sm:$0xff]
    %v133 = vpack.c.bf16 %v102, %v101
    %v134 = vpack.c.bf16 %v104, %v103
    %v135 = vpack.c.bf16 %v106, %v105
    %v136 = vpack.c.bf16 %v108, %v107
    %v137 = vpack.c.bf16 %v110, %v109
    %v138 = vpack.c.bf16 %v112, %v111
    %v139 = vpack.c.bf16 %v114, %v113
    %v140 = vpack.c.bf16 %v116, %v115
    %v141 = vpack.c.bf16 %v118, %v117
    %v142 = vpack.c.bf16 %v120, %v119
    %v143 = vpack.c.bf16 %v122, %v121
    %v144 = vpack.c.bf16 %v124, %v123
    %v145 = vpack.c.bf16 %v126, %v125
    %v146 = vpack.c.bf16 %v128, %v127
    %v147 = vpack.c.bf16 %v130, %v129
    %v148 = vpack.c.bf16 %v132, %v131
    %v149 = vld [vmem:[%s1] sm:$0xff]
    %v150 = vld [vmem:[%s2] sm:$0x3]
    %v152 = vlaneseq
    %v153 = vshrl.u32 %v152, 7
    %v154 = vsub.s32 0, %v153
    %v155 = vrot.slane %v150, %v154
    %v156 = vlaneseq
    %v157 = vshrl.u32 %v156, 7
    %v158 = vsub.s32 1, %v157
    %v159 = vrot.slane %v150, %v158
    %v163 = vunpack.c.l.b16 %v149
    %v164 = vunpack.c.h.b16 %v149
    %v165 = vpack.c.b16 %v163, %v163
    %v166 = vpack.c.b16 %v164, %v164
    %vm167 = vcmask 64512
    %v169 = vsel %vm167, %v133, 0
    %v172 = vsel %vm167, %v134, 0
    %v175 = vsel %vm167, %v135, 0
    %v178 = vsel %vm167, %v136, 0
    %v181 = vsel %vm167, %v137, 0
    %v184 = vsel %vm167, %v138, 0
    %v187 = vsel %vm167, %v139, 0
    %v190 = vsel %vm167, %v140, 0
    %v193 = vsel %vm167, %v141, 0
    %v196 = vsel %vm167, %v142, 0
    %v199 = vsel %vm167, %v143, 0
    %v202 = vsel %vm167, %v144, 0
    %v205 = vsel %vm167, %v145, 0
    %v208 = vsel %vm167, %v146, 0
    %v211 = vsel %vm167, %v147, 0
    %v214 = vsel %vm167, %v148, 0
    %vm216 = vcmask 1043456
    %v218 = vsel %vm216, %v165, 0
    %v221 = vsel %vm216, %v166, 0
    %223 = vmatprep.subr.bf16.mxu0 0
    %224 = vmatpush1.bf16.msra.mxu0 0
    %225 = vmatprep.subr.bf16.mxu0 0
    %226 = vmatpush1.bf16.msra.mxu0 0
    %227 = vmatprep.subr.bf16.mxu0 0
    %228 = vmatpush1.bf16.msra.mxu0 0
    %229 = vmatprep.subr.bf16.mxu0 0
    %230 = vmatpush1.bf16.msra.mxu0 0
    %231 = vmatprep.subr.bf16.mxu0 0
    %232 = vmatpush1.bf16.msra.mxu0 0
    %233 = vmatprep.subr.bf16.mxu0 0
    %234 = vmatpush1.bf16.msra.mxu0 0
    %235 = vmatprep.subr.bf16.mxu0 0
    %236 = vmatpush1.bf16.msra.mxu0 0
    %237 = vmatprep.subr.bf16.mxu0 %v221
    %238 = vmatpush1.bf16.msra.mxu0 %v218
    %239 = vmatprep.subr.bf16.mxu0 0
    %240 = vmatpush2.bf16.msra.mxu0 0
    %241 = vmatprep.subr.bf16.mxu0 0
    %242 = vmatpush2.bf16.msra.mxu0 0
    %243 = vmatprep.subr.bf16.mxu0 0
    %244 = vmatpush2.bf16.msra.mxu0 0
    %245 = vmatprep.subr.bf16.mxu0 0
    %246 = vmatpush2.bf16.msra.mxu0 0
    %247 = vmatprep.subr.bf16.mxu0 0
    %248 = vmatpush2.bf16.msra.mxu0 0
    %249 = vmatprep.subr.bf16.mxu0 0
    %250 = vmatpush2.bf16.msra.mxu0 0
    %251 = vmatprep.subr.bf16.mxu0 0
    %252 = vmatpush2.bf16.msra.mxu0 0
    %253 = vmatprep.subr.bf16.mxu0 0
    %254 = vmatpush2.bf16.msra.mxu0 0
    %255 = vmatprep.mubr.bf16.mxu0 0
    %256 = vmatmul.mubr.bf16.gmra.mxu0 %v169
    %v257 = vpop.f32.mrf.mxu0
    %v258 = vadd.f32 %v155, %v257
    %v259 = vpop.f32.mrf.mxu0
    %v260 = vadd.f32 %v159, %v259
    %v261 = vpop.f32.mrf.mxu0
    %v262 = vadd.f32 %v155, %v261
    %v263 = vpop.f32.mrf.mxu0
    %v264 = vadd.f32 %v159, %v263
    %265 = vmatprep.mubr.bf16.mxu0 0
    %266 = vmatmul.mubr.bf16.gmra.mxu0 %v172
    %v267 = vpop.f32.mrf.mxu0
    %v268 = vadd.f32 %v155, %v267
    %v269 = vpop.f32.mrf.mxu0
    %v270 = vadd.f32 %v159, %v269
    %v271 = vpop.f32.mrf.mxu0
    %v272 = vadd.f32 %v155, %v271
    %v273 = vpop.f32.mrf.mxu0
    %v274 = vadd.f32 %v159, %v273
    %275 = vmatprep.mubr.bf16.mxu0 0
    %276 = vmatmul.mubr.bf16.gmra.mxu0 %v175
    %v277 = vpop.f32.mrf.mxu0
    %v278 = vadd.f32 %v155, %v277
    %v279 = vpop.f32.mrf.mxu0
    %v280 = vadd.f32 %v159, %v279
    %v281 = vpop.f32.mrf.mxu0
    %v282 = vadd.f32 %v155, %v281
    %v283 = vpop.f32.mrf.mxu0
    %v284 = vadd.f32 %v159, %v283
    %285 = vmatprep.mubr.bf16.mxu0 0
    %286 = vmatmul.mubr.bf16.gmra.mxu0 %v178
    %v287 = vpop.f32.mrf.mxu0
    %v288 = vadd.f32 %v155, %v287
    %v289 = vpop.f32.mrf.mxu0
    %v290 = vadd.f32 %v159, %v289
    %v291 = vpop.f32.mrf.mxu0
    %v292 = vadd.f32 %v155, %v291
    %v293 = vpop.f32.mrf.mxu0
    %v294 = vadd.f32 %v159, %v293
    %295 = vmatprep.mubr.bf16.mxu0 0
    %296 = vmatmul.mubr.bf16.gmra.mxu0 %v181
    %v297 = vpop.f32.mrf.mxu0
    %v298 = vadd.f32 %v155, %v297
    %v299 = vpop.f32.mrf.mxu0
    %v300 = vadd.f32 %v159, %v299
    %v301 = vpop.f32.mrf.mxu0
    %v302 = vadd.f32 %v155, %v301
    %v303 = vpop.f32.mrf.mxu0
    %v304 = vadd.f32 %v159, %v303
    %305 = vmatprep.mubr.bf16.mxu0 0
    %306 = vmatmul.mubr.bf16.gmra.mxu0 %v184
    %v307 = vpop.f32.mrf.mxu0
    %v308 = vadd.f32 %v155, %v307
    %v309 = vpop.f32.mrf.mxu0
    %v310 = vadd.f32 %v159, %v309
    %v311 = vpop.f32.mrf.mxu0
    %v312 = vadd.f32 %v155, %v311
    %v313 = vpop.f32.mrf.mxu0
    %v314 = vadd.f32 %v159, %v313
    %315 = vmatprep.mubr.bf16.mxu0 0
    %316 = vmatmul.mubr.bf16.gmra.mxu0 %v187
    %v317 = vpop.f32.mrf.mxu0
    %v318 = vadd.f32 %v155, %v317
    %v319 = vpop.f32.mrf.mxu0
    %v320 = vadd.f32 %v159, %v319
    %v321 = vpop.f32.mrf.mxu0
    %v322 = vadd.f32 %v155, %v321
    %v323 = vpop.f32.mrf.mxu0
    %v324 = vadd.f32 %v159, %v323
    %325 = vmatprep.mubr.bf16.mxu0 0
    %326 = vmatmul.mubr.bf16.gmra.mxu0 %v190
    %v327 = vpop.f32.mrf.mxu0
    %v328 = vadd.f32 %v155, %v327
    %v329 = vpop.f32.mrf.mxu0
    %v330 = vadd.f32 %v159, %v329
    %v331 = vpop.f32.mrf.mxu0
    %v332 = vadd.f32 %v155, %v331
    %v333 = vpop.f32.mrf.mxu0
    %v334 = vadd.f32 %v159, %v333
    %335 = vmatprep.mubr.bf16.mxu0 0
    %336 = vmatmul.mubr.bf16.gmra.mxu0 %v193
    %v337 = vpop.f32.mrf.mxu0
    %v338 = vadd.f32 %v155, %v337
    %v339 = vpop.f32.mrf.mxu0
    %v340 = vadd.f32 %v159, %v339
    %v341 = vpop.f32.mrf.mxu0
    %v342 = vadd.f32 %v155, %v341
    %v343 = vpop.f32.mrf.mxu0
    %v344 = vadd.f32 %v159, %v343
    %345 = vmatprep.mubr.bf16.mxu0 0
    %346 = vmatmul.mubr.bf16.gmra.mxu0 %v196
    %v347 = vpop.f32.mrf.mxu0
    %v348 = vadd.f32 %v155, %v347
    %v349 = vpop.f32.mrf.mxu0
    %v350 = vadd.f32 %v159, %v349
    %v351 = vpop.f32.mrf.mxu0
    %v352 = vadd.f32 %v155, %v351
    %v353 = vpop.f32.mrf.mxu0
    %v354 = vadd.f32 %v159, %v353
    %355 = vmatprep.mubr.bf16.mxu0 0
    %356 = vmatmul.mubr.bf16.gmra.mxu0 %v199
    %v357 = vpop.f32.mrf.mxu0
    %v358 = vadd.f32 %v155, %v357
    %v359 = vpop.f32.mrf.mxu0
    %v360 = vadd.f32 %v159, %v359
    %v361 = vpop.f32.mrf.mxu0
    %v362 = vadd.f32 %v155, %v361
    %v363 = vpop.f32.mrf.mxu0
    %v364 = vadd.f32 %v159, %v363
    %365 = vmatprep.mubr.bf16.mxu0 0
    %366 = vmatmul.mubr.bf16.gmra.mxu0 %v202
    %v367 = vpop.f32.mrf.mxu0
    %v368 = vadd.f32 %v155, %v367
    %v369 = vpop.f32.mrf.mxu0
    %v370 = vadd.f32 %v159, %v369
    %v371 = vpop.f32.mrf.mxu0
    %v372 = vadd.f32 %v155, %v371
    %v373 = vpop.f32.mrf.mxu0
    %v374 = vadd.f32 %v159, %v373
    %375 = vmatprep.mubr.bf16.mxu0 0
    %376 = vmatmul.mubr.bf16.gmra.mxu0 %v205
    %v377 = vpop.f32.mrf.mxu0
    %v378 = vadd.f32 %v155, %v377
    %v379 = vpop.f32.mrf.mxu0
    %v380 = vadd.f32 %v159, %v379
    %v381 = vpop.f32.mrf.mxu0
    %v382 = vadd.f32 %v155, %v381
    %v383 = vpop.f32.mrf.mxu0
    %v384 = vadd.f32 %v159, %v383
    %385 = vmatprep.mubr.bf16.mxu0 0
    %386 = vmatmul.mubr.bf16.gmra.mxu0 %v208
    %v387 = vpop.f32.mrf.mxu0
    %v388 = vadd.f32 %v155, %v387
    %v389 = vpop.f32.mrf.mxu0
    %v390 = vadd.f32 %v159, %v389
    %v391 = vpop.f32.mrf.mxu0
    %v392 = vadd.f32 %v155, %v391
    %v393 = vpop.f32.mrf.mxu0
    %v394 = vadd.f32 %v159, %v393
    %395 = vmatprep.mubr.bf16.mxu0 0
    %396 = vmatmul.mubr.bf16.gmra.mxu0 %v211
    %v397 = vpop.f32.mrf.mxu0
    %v398 = vadd.f32 %v155, %v397
    %v399 = vpop.f32.mrf.mxu0
    %v400 = vadd.f32 %v159, %v399
    %v401 = vpop.f32.mrf.mxu0
    %v402 = vadd.f32 %v155, %v401
    %v403 = vpop.f32.mrf.mxu0
    %v404 = vadd.f32 %v159, %v403
    %405 = vmatprep.mubr.bf16.mxu0 0
    %406 = vmatmul.mubr.bf16.gmra.mxu0 %v214
    %v407 = vpop.f32.mrf.mxu0
    %v408 = vadd.f32 %v155, %v407
    %v409 = vpop.f32.mrf.mxu0
    %v410 = vadd.f32 %v159, %v409
    %v411 = vpop.f32.mrf.mxu0
    %v412 = vadd.f32 %v155, %v411
    %v413 = vpop.f32.mrf.mxu0
    %v414 = vadd.f32 %v159, %v413
    %415 = vdwg.mxu0
    %v416 = vmax.f32 %v258, 0.0
    %v417 = vmax.f32 %v260, 0.0
    %v418 = vmax.f32 %v262, 0.0
    %v419 = vmax.f32 %v264, 0.0
    %v420 = vmax.f32 %v268, 0.0
    %v421 = vmax.f32 %v270, 0.0
    %v422 = vmax.f32 %v272, 0.0
    %v423 = vmax.f32 %v274, 0.0
    %v424 = vmax.f32 %v278, 0.0
    %v425 = vmax.f32 %v280, 0.0
    %v426 = vmax.f32 %v282, 0.0
    %v427 = vmax.f32 %v284, 0.0
    %v428 = vmax.f32 %v288, 0.0
    %v429 = vmax.f32 %v290, 0.0
    %v430 = vmax.f32 %v292, 0.0
    %v431 = vmax.f32 %v294, 0.0
    %v432 = vmax.f32 %v298, 0.0
    %v433 = vmax.f32 %v300, 0.0
    %v434 = vmax.f32 %v302, 0.0
    %v435 = vmax.f32 %v304, 0.0
    %v436 = vmax.f32 %v308, 0.0
    %v437 = vmax.f32 %v310, 0.0
    %v438 = vmax.f32 %v312, 0.0
    %v439 = vmax.f32 %v314, 0.0
    %v440 = vmax.f32 %v318, 0.0
    %v441 = vmax.f32 %v320, 0.0
    %v442 = vmax.f32 %v322, 0.0
    %v443 = vmax.f32 %v324, 0.0
    %v444 = vmax.f32 %v328, 0.0
    %v445 = vmax.f32 %v330, 0.0
    %v446 = vmax.f32 %v332, 0.0
    %v447 = vmax.f32 %v334, 0.0
    %v448 = vmax.f32 %v338, 0.0
    %v449 = vmax.f32 %v340, 0.0
    %v450 = vmax.f32 %v342, 0.0
    %v451 = vmax.f32 %v344, 0.0
    %v452 = vmax.f32 %v348, 0.0
    %v453 = vmax.f32 %v350, 0.0
    %v454 = vmax.f32 %v352, 0.0
    %v455 = vmax.f32 %v354, 0.0
    %v456 = vmax.f32 %v358, 0.0
    %v457 = vmax.f32 %v360, 0.0
    %v458 = vmax.f32 %v362, 0.0
    %v459 = vmax.f32 %v364, 0.0
    %v460 = vmax.f32 %v368, 0.0
    %v461 = vmax.f32 %v370, 0.0
    %v462 = vmax.f32 %v372, 0.0
    %v463 = vmax.f32 %v374, 0.0
    %v464 = vmax.f32 %v378, 0.0
    %v465 = vmax.f32 %v380, 0.0
    %v466 = vmax.f32 %v382, 0.0
    %v467 = vmax.f32 %v384, 0.0
    %v468 = vmax.f32 %v388, 0.0
    %v469 = vmax.f32 %v390, 0.0
    %v470 = vmax.f32 %v392, 0.0
    %v471 = vmax.f32 %v394, 0.0
    %v472 = vmax.f32 %v398, 0.0
    %v473 = vmax.f32 %v400, 0.0
    %v474 = vmax.f32 %v402, 0.0
    %v475 = vmax.f32 %v404, 0.0
    %v476 = vmax.f32 %v408, 0.0
    %v477 = vmax.f32 %v410, 0.0
    %v478 = vmax.f32 %v412, 0.0
    %v479 = vmax.f32 %v414, 0.0
    %v480 = vpack.c.bf16 %v418, %v416
    %v481 = vpack.c.bf16 %v419, %v417
    %v482 = vpack.c.bf16 %v422, %v420
    %v483 = vpack.c.bf16 %v423, %v421
    %v484 = vpack.c.bf16 %v426, %v424
    %v485 = vpack.c.bf16 %v427, %v425
    %v486 = vpack.c.bf16 %v430, %v428
    %v487 = vpack.c.bf16 %v431, %v429
    %v488 = vpack.c.bf16 %v434, %v432
    %v489 = vpack.c.bf16 %v435, %v433
    %v490 = vpack.c.bf16 %v438, %v436
    %v491 = vpack.c.bf16 %v439, %v437
    %v492 = vpack.c.bf16 %v442, %v440
    %v493 = vpack.c.bf16 %v443, %v441
    %v494 = vpack.c.bf16 %v446, %v444
    %v495 = vpack.c.bf16 %v447, %v445
    %v496 = vpack.c.bf16 %v450, %v448
    %v497 = vpack.c.bf16 %v451, %v449
    %v498 = vpack.c.bf16 %v454, %v452
    %v499 = vpack.c.bf16 %v455, %v453
    %v500 = vpack.c.bf16 %v458, %v456
    %v501 = vpack.c.bf16 %v459, %v457
    %v502 = vpack.c.bf16 %v462, %v460
    %v503 = vpack.c.bf16 %v463, %v461
    %v504 = vpack.c.bf16 %v466, %v464
    %v505 = vpack.c.bf16 %v467, %v465
    %v506 = vpack.c.bf16 %v470, %v468
    %v507 = vpack.c.bf16 %v471, %v469
    %v508 = vpack.c.bf16 %v474, %v472
    %v509 = vpack.c.bf16 %v475, %v473
    %v510 = vpack.c.bf16 %v478, %v476
    %v511 = vpack.c.bf16 %v479, %v477
    %v512 = vld [vmem:[%s3] sm:$0xff]
    %v513 = vld [vmem:[%s3 + $0x8] sm:$0xff]
    %v514 = vld [vmem:[%s3 + $0x10] sm:$0xff]
    %v515 = vld [vmem:[%s3 + $0x18] sm:$0xff]
    %v516 = vld [vmem:[%s3 + $0x20] sm:$0xff]
    %v517 = vld [vmem:[%s3 + $0x28] sm:$0xff]
    %v518 = vld [vmem:[%s3 + $0x30] sm:$0xff]
    %v519 = vld [vmem:[%s3 + $0x38] sm:$0xff]
    %v520 = vld [vmem:[%s3 + $0x40] sm:$0xff]
    %v521 = vld [vmem:[%s3 + $0x48] sm:$0xff]
    %v522 = vld [vmem:[%s3 + $0x50] sm:$0xff]
    %v523 = vld [vmem:[%s3 + $0x58] sm:$0xff]
    %v524 = vld [vmem:[%s3 + $0x60] sm:$0xff]
    %v525 = vld [vmem:[%s3 + $0x68] sm:$0xff]
    %v526 = vld [vmem:[%s3 + $0x70] sm:$0xff]
    %v527 = vld [vmem:[%s3 + $0x78] sm:$0xff]
    %v528 = vld [vmem:[%s3 + $0x80] sm:$0xff]
    %v529 = vld [vmem:[%s3 + $0x88] sm:$0xff]
    %v530 = vld [vmem:[%s3 + $0x90] sm:$0xff]
    %v531 = vld [vmem:[%s3 + $0x98] sm:$0xff]
    %v532 = vld [vmem:[%s3 + $0xa0] sm:$0xff]
    %v533 = vld [vmem:[%s3 + $0xa8] sm:$0xff]
    %v534 = vld [vmem:[%s3 + $0xb0] sm:$0xff]
    %v535 = vld [vmem:[%s3 + $0xb8] sm:$0xff]
    %v536 = vld [vmem:[%s3 + $0xc0] sm:$0xff]
    %v537 = vld [vmem:[%s3 + $0xc8] sm:$0xff]
    %v538 = vld [vmem:[%s3 + $0xd0] sm:$0xff]
    %v539 = vld [vmem:[%s3 + $0xd8] sm:$0xff]
    %v540 = vld [vmem:[%s3 + $0xe0] sm:$0xff]
    %v541 = vld [vmem:[%s3 + $0xe8] sm:$0xff]
    %v542 = vld [vmem:[%s3 + $0xf0] sm:$0xff]
    %v543 = vld [vmem:[%s3 + $0xf8] sm:$0xff]
    %v544 = vld [vmem:[%s4] sm:$0x3]
    %v546 = vlaneseq
    %v547 = vshrl.u32 %v546, 7
    %v548 = vsub.s32 0, %v547
    %v549 = vrot.slane %v544, %v548
    %v550 = vlaneseq
    %v551 = vshrl.u32 %v550, 7
    %v552 = vsub.s32 1, %v551
    %v553 = vrot.slane %v544, %v552
    %v588 = vunpack.c.l.b16 %v512
    %v589 = vunpack.c.h.b16 %v512
    %v590 = vunpack.c.l.b16 %v513
    %v591 = vunpack.c.h.b16 %v513
    %v592 = vunpack.c.l.b16 %v514
    %v593 = vunpack.c.h.b16 %v514
    %v594 = vunpack.c.l.b16 %v515
    %v595 = vunpack.c.h.b16 %v515
    %v596 = vunpack.c.l.b16 %v516
    %v597 = vunpack.c.h.b16 %v516
    %v598 = vunpack.c.l.b16 %v517
    %v599 = vunpack.c.h.b16 %v517
    %v600 = vunpack.c.l.b16 %v518
    %v601 = vunpack.c.h.b16 %v518
    %v602 = vunpack.c.l.b16 %v519
    %v603 = vunpack.c.h.b16 %v519
    %v604 = vunpack.c.l.b16 %v520
    %v605 = vunpack.c.h.b16 %v520
    %v606 = vunpack.c.l.b16 %v521
    %v607 = vunpack.c.h.b16 %v521
    %v608 = vunpack.c.l.b16 %v522
    %v609 = vunpack.c.h.b16 %v522
    %v610 = vunpack.c.l.b16 %v523
    %v611 = vunpack.c.h.b16 %v523
    %v612 = vunpack.c.l.b16 %v524
    %v613 = vunpack.c.h.b16 %v524
    %v614 = vunpack.c.l.b16 %v525
    %v615 = vunpack.c.h.b16 %v525
    %v616 = vunpack.c.l.b16 %v526
    %v617 = vunpack.c.h.b16 %v526
    %v618 = vunpack.c.l.b16 %v527
    %v619 = vunpack.c.h.b16 %v527
    %v620 = vunpack.c.l.b16 %v528
    %v621 = vunpack.c.h.b16 %v528
    %v622 = vunpack.c.l.b16 %v529
    %v623 = vunpack.c.h.b16 %v529
    %v624 = vunpack.c.l.b16 %v530
    %v625 = vunpack.c.h.b16 %v530
    %v626 = vunpack.c.l.b16 %v531
    %v627 = vunpack.c.h.b16 %v531
    %v628 = vunpack.c.l.b16 %v532
    %v629 = vunpack.c.h.b16 %v532
    %v630 = vunpack.c.l.b16 %v533
    %v631 = vunpack.c.h.b16 %v533
    %v632 = vunpack.c.l.b16 %v534
    %v633 = vunpack.c.h.b16 %v534
    %v634 = vunpack.c.l.b16 %v535
    %v635 = vunpack.c.h.b16 %v535
    %v636 = vunpack.c.l.b16 %v536
    %v637 = vunpack.c.h.b16 %v536
    %v638 = vunpack.c.l.b16 %v537
    %v639 = vunpack.c.h.b16 %v537
    %v640 = vunpack.c.l.b16 %v538
    %v641 = vunpack.c.h.b16 %v538
    %v642 = vunpack.c.l.b16 %v539
    %v643 = vunpack.c.h.b16 %v539
    %v644 = vunpack.c.l.b16 %v540
    %v645 = vunpack.c.h.b16 %v540
    %v646 = vunpack.c.l.b16 %v541
    %v647 = vunpack.c.h.b16 %v541
    %v648 = vunpack.c.l.b16 %v542
    %v649 = vunpack.c.h.b16 %v542
    %v650 = vunpack.c.l.b16 %v543
    %v651 = vunpack.c.h.b16 %v543
    %v652 = vpack.c.b16 %v590, %v588
    %v653 = vpack.c.b16 %v591, %v589
    %v654 = vpack.c.b16 %v594, %v592
    %v655 = vpack.c.b16 %v595, %v593
    %v656 = vpack.c.b16 %v598, %v596
    %v657 = vpack.c.b16 %v599, %v597
    %v658 = vpack.c.b16 %v602, %v600
    %v659 = vpack.c.b16 %v603, %v601
    %v660 = vpack.c.b16 %v606, %v604
    %v661 = vpack.c.b16 %v607, %v605
    %v662 = vpack.c.b16 %v610, %v608
    %v663 = vpack.c.b16 %v611, %v609
    %v664 = vpack.c.b16 %v614, %v612
    %v665 = vpack.c.b16 %v615, %v613
    %v666 = vpack.c.b16 %v618, %v616
    %v667 = vpack.c.b16 %v619, %v617
    %v668 = vpack.c.b16 %v622, %v620
    %v669 = vpack.c.b16 %v623, %v621
    %v670 = vpack.c.b16 %v626, %v624
    %v671 = vpack.c.b16 %v627, %v625
    %v672 = vpack.c.b16 %v630, %v628
    %v673 = vpack.c.b16 %v631, %v629
    %v674 = vpack.c.b16 %v634, %v632
    %v675 = vpack.c.b16 %v635, %v633
    %v676 = vpack.c.b16 %v638, %v636
    %v677 = vpack.c.b16 %v639, %v637
    %v678 = vpack.c.b16 %v642, %v640
    %v679 = vpack.c.b16 %v643, %v641
    %v680 = vpack.c.b16 %v646, %v644
    %v681 = vpack.c.b16 %v647, %v645
    %v682 = vpack.c.b16 %v650, %v648
    %v683 = vpack.c.b16 %v651, %v649
    %716 = vmatprep.subr.bf16.mxu0 %v667
    %717 = vmatpush1.bf16.msra.mxu0 %v666
    %718 = vmatprep.subr.bf16.mxu0 %v665
    %719 = vmatpush1.bf16.msra.mxu0 %v664
    %720 = vmatprep.subr.bf16.mxu0 %v663
    %721 = vmatpush1.bf16.msra.mxu0 %v662
    %722 = vmatprep.subr.bf16.mxu0 %v661
    %723 = vmatpush1.bf16.msra.mxu0 %v660
    %724 = vmatprep.subr.bf16.mxu0 %v659
    %725 = vmatpush1.bf16.msra.mxu0 %v658
    %726 = vmatprep.subr.bf16.mxu0 %v657
    %727 = vmatpush1.bf16.msra.mxu0 %v656
    %728 = vmatprep.subr.bf16.mxu0 %v655
    %729 = vmatpush1.bf16.msra.mxu0 %v654
    %730 = vmatprep.subr.bf16.mxu0 %v653
    %731 = vmatpush1.bf16.msra.mxu0 %v652
    %732 = vmatprep.subr.bf16.mxu0 %v683
    %733 = vmatpush2.bf16.msra.mxu0 %v682
    %734 = vmatprep.subr.bf16.mxu0 %v681
    %735 = vmatpush2.bf16.msra.mxu0 %v680
    %736 = vmatprep.subr.bf16.mxu0 %v679
    %737 = vmatpush2.bf16.msra.mxu0 %v678
    %738 = vmatprep.subr.bf16.mxu0 %v677
    %739 = vmatpush2.bf16.msra.mxu0 %v676
    %740 = vmatprep.subr.bf16.mxu0 %v675
    %741 = vmatpush2.bf16.msra.mxu0 %v674
    %742 = vmatprep.subr.bf16.mxu0 %v673
    %743 = vmatpush2.bf16.msra.mxu0 %v672
    %744 = vmatprep.subr.bf16.mxu0 %v671
    %745 = vmatpush2.bf16.msra.mxu0 %v670
    %746 = vmatprep.subr.bf16.mxu0 %v669
    %747 = vmatpush2.bf16.msra.mxu0 %v668
    %748 = vmatprep.mubr.bf16.mxu0 %v481
    %749 = vmatmul.mubr.bf16.gmra.mxu0 %v480
    %v750 = vpop.f32.mrf.mxu0
    %v751 = vadd.f32 %v549, %v750
    %v752 = vpop.f32.mrf.mxu0
    %v753 = vadd.f32 %v553, %v752
    %v754 = vpop.f32.mrf.mxu0
    %v755 = vadd.f32 %v549, %v754
    %v756 = vpop.f32.mrf.mxu0
    %v757 = vadd.f32 %v553, %v756
    %758 = vmatprep.mubr.bf16.mxu0 %v483
    %759 = vmatmul.mubr.bf16.gmra.mxu0 %v482
    %v760 = vpop.f32.mrf.mxu0
    %v761 = vadd.f32 %v549, %v760
    %v762 = vpop.f32.mrf.mxu0
    %v763 = vadd.f32 %v553, %v762
    %v764 = vpop.f32.mrf.mxu0
    %v765 = vadd.f32 %v549, %v764
    %v766 = vpop.f32.mrf.mxu0
    %v767 = vadd.f32 %v553, %v766
    %768 = vmatprep.mubr.bf16.mxu0 %v485
    %769 = vmatmul.mubr.bf16.gmra.mxu0 %v484
    %v770 = vpop.f32.mrf.mxu0
    %v771 = vadd.f32 %v549, %v770
    %v772 = vpop.f32.mrf.mxu0
    %v773 = vadd.f32 %v553, %v772
    %v774 = vpop.f32.mrf.mxu0
    %v775 = vadd.f32 %v549, %v774
    %v776 = vpop.f32.mrf.mxu0
    %v777 = vadd.f32 %v553, %v776
    %778 = vmatprep.mubr.bf16.mxu0 %v487
    %779 = vmatmul.mubr.bf16.gmra.mxu0 %v486
    %v780 = vpop.f32.mrf.mxu0
    %v781 = vadd.f32 %v549, %v780
    %v782 = vpop.f32.mrf.mxu0
    %v783 = vadd.f32 %v553, %v782
    %v784 = vpop.f32.mrf.mxu0
    %v785 = vadd.f32 %v549, %v784
    %v786 = vpop.f32.mrf.mxu0
    %v787 = vadd.f32 %v553, %v786
    %788 = vmatprep.mubr.bf16.mxu0 %v489
    %789 = vmatmul.mubr.bf16.gmra.mxu0 %v488
    %v790 = vpop.f32.mrf.mxu0
    %v791 = vadd.f32 %v549, %v790
    %v792 = vpop.f32.mrf.mxu0
    %v793 = vadd.f32 %v553, %v792
    %v794 = vpop.f32.mrf.mxu0
    %v795 = vadd.f32 %v549, %v794
    %v796 = vpop.f32.mrf.mxu0
    %v797 = vadd.f32 %v553, %v796
    %798 = vmatprep.mubr.bf16.mxu0 %v491
    %799 = vmatmul.mubr.bf16.gmra.mxu0 %v490
    %v800 = vpop.f32.mrf.mxu0
    %v801 = vadd.f32 %v549, %v800
    %v802 = vpop.f32.mrf.mxu0
    %v803 = vadd.f32 %v553, %v802
    %v804 = vpop.f32.mrf.mxu0
    %v805 = vadd.f32 %v549, %v804
    %v806 = vpop.f32.mrf.mxu0
    %v807 = vadd.f32 %v553, %v806
    %808 = vmatprep.mubr.bf16.mxu0 %v493
    %809 = vmatmul.mubr.bf16.gmra.mxu0 %v492
    %v810 = vpop.f32.mrf.mxu0
    %v811 = vadd.f32 %v549, %v810
    %v812 = vpop.f32.mrf.mxu0
    %v813 = vadd.f32 %v553, %v812
    %v814 = vpop.f32.mrf.mxu0
    %v815 = vadd.f32 %v549, %v814
    %v816 = vpop.f32.mrf.mxu0
    %v817 = vadd.f32 %v553, %v816
    %818 = vmatprep.mubr.bf16.mxu0 %v495
    %819 = vmatmul.mubr.bf16.gmra.mxu0 %v494
    %v820 = vpop.f32.mrf.mxu0
    %v821 = vadd.f32 %v549, %v820
    %v822 = vpop.f32.mrf.mxu0
    %v823 = vadd.f32 %v553, %v822
    %v824 = vpop.f32.mrf.mxu0
    %v825 = vadd.f32 %v549, %v824
    %v826 = vpop.f32.mrf.mxu0
    %v827 = vadd.f32 %v553, %v826
    %828 = vmatprep.mubr.bf16.mxu0 %v497
    %829 = vmatmul.mubr.bf16.gmra.mxu0 %v496
    %v830 = vpop.f32.mrf.mxu0
    %v831 = vadd.f32 %v549, %v830
    %v832 = vpop.f32.mrf.mxu0
    %v833 = vadd.f32 %v553, %v832
    %v834 = vpop.f32.mrf.mxu0
    %v835 = vadd.f32 %v549, %v834
    %v836 = vpop.f32.mrf.mxu0
    %v837 = vadd.f32 %v553, %v836
    %838 = vmatprep.mubr.bf16.mxu0 %v499
    %839 = vmatmul.mubr.bf16.gmra.mxu0 %v498
    %v840 = vpop.f32.mrf.mxu0
    %v841 = vadd.f32 %v549, %v840
    %v842 = vpop.f32.mrf.mxu0
    %v843 = vadd.f32 %v553, %v842
    %v844 = vpop.f32.mrf.mxu0
    %v845 = vadd.f32 %v549, %v844
    %v846 = vpop.f32.mrf.mxu0
    %v847 = vadd.f32 %v553, %v846
    %848 = vmatprep.mubr.bf16.mxu0 %v501
    %849 = vmatmul.mubr.bf16.gmra.mxu0 %v500
    %v850 = vpop.f32.mrf.mxu0
    %v851 = vadd.f32 %v549, %v850
    %v852 = vpop.f32.mrf.mxu0
    %v853 = vadd.f32 %v553, %v852
    %v854 = vpop.f32.mrf.mxu0
    %v855 = vadd.f32 %v549, %v854
    %v856 = vpop.f32.mrf.mxu0
    %v857 = vadd.f32 %v553, %v856
    %858 = vmatprep.mubr.bf16.mxu0 %v503
    %859 = vmatmul.mubr.bf16.gmra.mxu0 %v502
    %v860 = vpop.f32.mrf.mxu0
    %v861 = vadd.f32 %v549, %v860
    %v862 = vpop.f32.mrf.mxu0
    %v863 = vadd.f32 %v553, %v862
    %v864 = vpop.f32.mrf.mxu0
    %v865 = vadd.f32 %v549, %v864
    %v866 = vpop.f32.mrf.mxu0
    %v867 = vadd.f32 %v553, %v866
    %868 = vmatprep.mubr.bf16.mxu0 %v505
    %869 = vmatmul.mubr.bf16.gmra.mxu0 %v504
    %v870 = vpop.f32.mrf.mxu0
    %v871 = vadd.f32 %v549, %v870
    %v872 = vpop.f32.mrf.mxu0
    %v873 = vadd.f32 %v553, %v872
    %v874 = vpop.f32.mrf.mxu0
    %v875 = vadd.f32 %v549, %v874
    %v876 = vpop.f32.mrf.mxu0
    %v877 = vadd.f32 %v553, %v876
    %878 = vmatprep.mubr.bf16.mxu0 %v507
    %879 = vmatmul.mubr.bf16.gmra.mxu0 %v506
    %v880 = vpop.f32.mrf.mxu0
    %v881 = vadd.f32 %v549, %v880
    %v882 = vpop.f32.mrf.mxu0
    %v883 = vadd.f32 %v553, %v882
    %v884 = vpop.f32.mrf.mxu0
    %v885 = vadd.f32 %v549, %v884
    %v886 = vpop.f32.mrf.mxu0
    %v887 = vadd.f32 %v553, %v886
    %888 = vmatprep.mubr.bf16.mxu0 %v509
    %889 = vmatmul.mubr.bf16.gmra.mxu0 %v508
    %v890 = vpop.f32.mrf.mxu0
    %v891 = vadd.f32 %v549, %v890
    %v892 = vpop.f32.mrf.mxu0
    %v893 = vadd.f32 %v553, %v892
    %v894 = vpop.f32.mrf.mxu0
    %v895 = vadd.f32 %v549, %v894
    %v896 = vpop.f32.mrf.mxu0
    %v897 = vadd.f32 %v553, %v896
    %898 = vmatprep.mubr.bf16.mxu0 %v511
    %899 = vmatmul.mubr.bf16.gmra.mxu0 %v510
    %v900 = vpop.f32.mrf.mxu0
    %v901 = vadd.f32 %v549, %v900
    %v902 = vpop.f32.mrf.mxu0
    %v903 = vadd.f32 %v553, %v902
    %v904 = vpop.f32.mrf.mxu0
    %v905 = vadd.f32 %v549, %v904
    %v906 = vpop.f32.mrf.mxu0
    %v907 = vadd.f32 %v553, %v906
    %908 = vdwg.mxu0
    %v909 = vmax.f32 %v751, 0.0
    %v910 = vmax.f32 %v753, 0.0
    %v911 = vmax.f32 %v755, 0.0
    %v912 = vmax.f32 %v757, 0.0
    %v913 = vmax.f32 %v761, 0.0
    %v914 = vmax.f32 %v763, 0.0
    %v915 = vmax.f32 %v765, 0.0
    %v916 = vmax.f32 %v767, 0.0
    %v917 = vmax.f32 %v771, 0.0
    %v918 = vmax.f32 %v773, 0.0
    %v919 = vmax.f32 %v775, 0.0
    %v920 = vmax.f32 %v777, 0.0
    %v921 = vmax.f32 %v781, 0.0
    %v922 = vmax.f32 %v783, 0.0
    %v923 = vmax.f32 %v785, 0.0
    %v924 = vmax.f32 %v787, 0.0
    %v925 = vmax.f32 %v791, 0.0
    %v926 = vmax.f32 %v793, 0.0
    %v927 = vmax.f32 %v795, 0.0
    %v928 = vmax.f32 %v797, 0.0
    %v929 = vmax.f32 %v801, 0.0
    %v930 = vmax.f32 %v803, 0.0
    %v931 = vmax.f32 %v805, 0.0
    %v932 = vmax.f32 %v807, 0.0
    %v933 = vmax.f32 %v811, 0.0
    %v934 = vmax.f32 %v813, 0.0
    %v935 = vmax.f32 %v815, 0.0
    %v936 = vmax.f32 %v817, 0.0
    %v937 = vmax.f32 %v821, 0.0
    %v938 = vmax.f32 %v823, 0.0
    %v939 = vmax.f32 %v825, 0.0
    %v940 = vmax.f32 %v827, 0.0
    %v941 = vmax.f32 %v831, 0.0
    %v942 = vmax.f32 %v833, 0.0
    %v943 = vmax.f32 %v835, 0.0
    %v944 = vmax.f32 %v837, 0.0
    %v945 = vmax.f32 %v841, 0.0
    %v946 = vmax.f32 %v843, 0.0
    %v947 = vmax.f32 %v845, 0.0
    %v948 = vmax.f32 %v847, 0.0
    %v949 = vmax.f32 %v851, 0.0
    %v950 = vmax.f32 %v853, 0.0
    %v951 = vmax.f32 %v855, 0.0
    %v952 = vmax.f32 %v857, 0.0
    %v953 = vmax.f32 %v861, 0.0
    %v954 = vmax.f32 %v863, 0.0
    %v955 = vmax.f32 %v865, 0.0
    %v956 = vmax.f32 %v867, 0.0
    %v957 = vmax.f32 %v871, 0.0
    %v958 = vmax.f32 %v873, 0.0
    %v959 = vmax.f32 %v875, 0.0
    %v960 = vmax.f32 %v877, 0.0
    %v961 = vmax.f32 %v881, 0.0
    %v962 = vmax.f32 %v883, 0.0
    %v963 = vmax.f32 %v885, 0.0
    %v964 = vmax.f32 %v887, 0.0
    %v965 = vmax.f32 %v891, 0.0
    %v966 = vmax.f32 %v893, 0.0
    %v967 = vmax.f32 %v895, 0.0
    %v968 = vmax.f32 %v897, 0.0
    %v969 = vmax.f32 %v901, 0.0
    %v970 = vmax.f32 %v903, 0.0
    %v971 = vmax.f32 %v905, 0.0
    %v972 = vmax.f32 %v907, 0.0
    %v973 = vpack.c.bf16 %v911, %v909
    %v974 = vpack.c.bf16 %v912, %v910
    %v975 = vpack.c.bf16 %v915, %v913
    %v976 = vpack.c.bf16 %v916, %v914
    %v977 = vpack.c.bf16 %v919, %v917
    %v978 = vpack.c.bf16 %v920, %v918
    %v979 = vpack.c.bf16 %v923, %v921
    %v980 = vpack.c.bf16 %v924, %v922
    %v981 = vpack.c.bf16 %v927, %v925
    %v982 = vpack.c.bf16 %v928, %v926
    %v983 = vpack.c.bf16 %v931, %v929
    %v984 = vpack.c.bf16 %v932, %v930
    %v985 = vpack.c.bf16 %v935, %v933
    %v986 = vpack.c.bf16 %v936, %v934
    %v987 = vpack.c.bf16 %v939, %v937
    %v988 = vpack.c.bf16 %v940, %v938
    %v989 = vpack.c.bf16 %v943, %v941
    %v990 = vpack.c.bf16 %v944, %v942
    %v991 = vpack.c.bf16 %v947, %v945
    %v992 = vpack.c.bf16 %v948, %v946
    %v993 = vpack.c.bf16 %v951, %v949
    %v994 = vpack.c.bf16 %v952, %v950
    %v995 = vpack.c.bf16 %v955, %v953
    %v996 = vpack.c.bf16 %v956, %v954
    %v997 = vpack.c.bf16 %v959, %v957
    %v998 = vpack.c.bf16 %v960, %v958
    %v999 = vpack.c.bf16 %v963, %v961
    %v1000 = vpack.c.bf16 %v964, %v962
    %v1001 = vpack.c.bf16 %v967, %v965
    %v1002 = vpack.c.bf16 %v968, %v966
    %v1003 = vpack.c.bf16 %v971, %v969
    %v1004 = vpack.c.bf16 %v972, %v970
    %v1005 = vld [vmem:[#allocation2] sm:$0xff]
    %v1006 = vld [vmem:[#allocation2 + $0x8] sm:$0xff]
    %v1007 = vld [vmem:[#allocation2 + $0x10] sm:$0xff]
    %v1008 = vld [vmem:[#allocation2 + $0x18] sm:$0xff]
    %v1009 = vld [vmem:[#allocation2 + $0x20] sm:$0xff]
    %v1010 = vld [vmem:[#allocation2 + $0x28] sm:$0xff]
    %v1011 = vld [vmem:[#allocation2 + $0x30] sm:$0xff]
    %v1012 = vld [vmem:[#allocation2 + $0x38] sm:$0xff]
    %v1013 = vld [vmem:[#allocation2 + $0x40] sm:$0xff]
    %v1014 = vld [vmem:[#allocation2 + $0x48] sm:$0xff]
    %v1015 = vld [vmem:[#allocation2 + $0x50] sm:$0xff]
    %v1016 = vld [vmem:[#allocation2 + $0x58] sm:$0xff]
    %v1017 = vld [vmem:[#allocation2 + $0x60] sm:$0xff]
    %v1018 = vld [vmem:[#allocation2 + $0x68] sm:$0xff]
    %v1019 = vld [vmem:[#allocation2 + $0x70] sm:$0xff]
    %v1020 = vld [vmem:[#allocation2 + $0x78] sm:$0xff]
    %v1021 = vld [vmem:[#allocation2 + $0x80] sm:$0xff]
    %v1022 = vld [vmem:[#allocation2 + $0x88] sm:$0xff]
    %v1023 = vld [vmem:[#allocation2 + $0x90] sm:$0xff]
    %v1024 = vld [vmem:[#allocation2 + $0x98] sm:$0xff]
    %v1025 = vld [vmem:[#allocation2 + $0xa0] sm:$0xff]
    %v1026 = vld [vmem:[#allocation2 + $0xa8] sm:$0xff]
    %v1027 = vld [vmem:[#allocation2 + $0xb0] sm:$0xff]
    %v1028 = vld [vmem:[#allocation2 + $0xb8] sm:$0xff]
    %v1029 = vld [vmem:[#allocation2 + $0xc0] sm:$0xff]
    %v1030 = vld [vmem:[#allocation2 + $0xc8] sm:$0xff]
    %v1031 = vld [vmem:[#allocation2 + $0xd0] sm:$0xff]
    %v1032 = vld [vmem:[#allocation2 + $0xd8] sm:$0xff]
    %v1033 = vld [vmem:[#allocation2 + $0xe0] sm:$0xff]
    %v1034 = vld [vmem:[#allocation2 + $0xe8] sm:$0xff]
    %v1035 = vld [vmem:[#allocation2 + $0xf0] sm:$0xff]
    %v1036 = vld [vmem:[#allocation2 + $0xf8] sm:$0xff]
    %v1037 = vld [vmem:[%s6] sm:$0x3]
    %v1039 = vlaneseq
    %v1040 = vshrl.u32 %v1039, 7
    %v1041 = vsub.s32 0, %v1040
    %v1042 = vrot.slane %v1037, %v1041
    %v1043 = vlaneseq
    %v1044 = vshrl.u32 %v1043, 7
    %v1045 = vsub.s32 1, %v1044
    %v1046 = vrot.slane %v1037, %v1045
    %v1081 = vunpack.c.l.b16 %v1005
    %v1082 = vunpack.c.h.b16 %v1005
    %v1083 = vunpack.c.l.b16 %v1006
    %v1084 = vunpack.c.h.b16 %v1006
    %v1085 = vunpack.c.l.b16 %v1007
    %v1086 = vunpack.c.h.b16 %v1007
    %v1087 = vunpack.c.l.b16 %v1008
    %v1088 = vunpack.c.h.b16 %v1008
    %v1089 = vunpack.c.l.b16 %v1009
    %v1090 = vunpack.c.h.b16 %v1009
    %v1091 = vunpack.c.l.b16 %v1010
    %v1092 = vunpack.c.h.b16 %v1010
    %v1093 = vunpack.c.l.b16 %v1011
    %v1094 = vunpack.c.h.b16 %v1011
    %v1095 = vunpack.c.l.b16 %v1012
    %v1096 = vunpack.c.h.b16 %v1012
    %v1097 = vunpack.c.l.b16 %v1013
    %v1098 = vunpack.c.h.b16 %v1013
    %v1099 = vunpack.c.l.b16 %v1014
    %v1100 = vunpack.c.h.b16 %v1014
    %v1101 = vunpack.c.l.b16 %v1015
    %v1102 = vunpack.c.h.b16 %v1015
    %v1103 = vunpack.c.l.b16 %v1016
    %v1104 = vunpack.c.h.b16 %v1016
    %v1105 = vunpack.c.l.b16 %v1017
    %v1106 = vunpack.c.h.b16 %v1017
    %v1107 = vunpack.c.l.b16 %v1018
    %v1108 = vunpack.c.h.b16 %v1018
    %v1109 = vunpack.c.l.b16 %v1019
    %v1110 = vunpack.c.h.b16 %v1019
    %v1111 = vunpack.c.l.b16 %v1020
    %v1112 = vunpack.c.h.b16 %v1020
    %v1113 = vunpack.c.l.b16 %v1021
    %v1114 = vunpack.c.h.b16 %v1021
    %v1115 = vunpack.c.l.b16 %v1022
    %v1116 = vunpack.c.h.b16 %v1022
    %v1117 = vunpack.c.l.b16 %v1023
    %v1118 = vunpack.c.h.b16 %v1023
    %v1119 = vunpack.c.l.b16 %v1024
    %v1120 = vunpack.c.h.b16 %v1024
    %v1121 = vunpack.c.l.b16 %v1025
    %v1122 = vunpack.c.h.b16 %v1025
    %v1123 = vunpack.c.l.b16 %v1026
    %v1124 = vunpack.c.h.b16 %v1026
    %v1125 = vunpack.c.l.b16 %v1027
    %v1126 = vunpack.c.h.b16 %v1027
    %v1127 = vunpack.c.l.b16 %v1028
    %v1128 = vunpack.c.h.b16 %v1028
    %v1129 = vunpack.c.l.b16 %v1029
    %v1130 = vunpack.c.h.b16 %v1029
    %v1131 = vunpack.c.l.b16 %v1030
    %v1132 = vunpack.c.h.b16 %v1030
    %v1133 = vunpack.c.l.b16 %v1031
    %v1134 = vunpack.c.h.b16 %v1031
    %v1135 = vunpack.c.l.b16 %v1032
    %v1136 = vunpack.c.h.b16 %v1032
    %v1137 = vunpack.c.l.b16 %v1033
    %v1138 = vunpack.c.h.b16 %v1033
    %v1139 = vunpack.c.l.b16 %v1034
    %v1140 = vunpack.c.h.b16 %v1034
    %v1141 = vunpack.c.l.b16 %v1035
    %v1142 = vunpack.c.h.b16 %v1035
    %v1143 = vunpack.c.l.b16 %v1036
    %v1144 = vunpack.c.h.b16 %v1036
    %v1145 = vpack.c.b16 %v1083, %v1081
    %v1146 = vpack.c.b16 %v1084, %v1082
    %v1147 = vpack.c.b16 %v1087, %v1085
    %v1148 = vpack.c.b16 %v1088, %v1086
    %v1149 = vpack.c.b16 %v1091, %v1089
    %v1150 = vpack.c.b16 %v1092, %v1090
    %v1151 = vpack.c.b16 %v1095, %v1093
    %v1152 = vpack.c.b16 %v1096, %v1094
    %v1153 = vpack.c.b16 %v1099, %v1097
    %v1154 = vpack.c.b16 %v1100, %v1098
    %v1155 = vpack.c.b16 %v1103, %v1101
    %v1156 = vpack.c.b16 %v1104, %v1102
    %v1157 = vpack.c.b16 %v1107, %v1105
    %v1158 = vpack.c.b16 %v1108, %v1106
    %v1159 = vpack.c.b16 %v1111, %v1109
    %v1160 = vpack.c.b16 %v1112, %v1110
    %v1161 = vpack.c.b16 %v1115, %v1113
    %v1162 = vpack.c.b16 %v1116, %v1114
    %v1163 = vpack.c.b16 %v1119, %v1117
    %v1164 = vpack.c.b16 %v1120, %v1118
    %v1165 = vpack.c.b16 %v1123, %v1121
    %v1166 = vpack.c.b16 %v1124, %v1122
    %v1167 = vpack.c.b16 %v1127, %v1125
    %v1168 = vpack.c.b16 %v1128, %v1126
    %v1169 = vpack.c.b16 %v1131, %v1129
    %v1170 = vpack.c.b16 %v1132, %v1130
    %v1171 = vpack.c.b16 %v1135, %v1133
    %v1172 = vpack.c.b16 %v1136, %v1134
    %v1173 = vpack.c.b16 %v1139, %v1137
    %v1174 = vpack.c.b16 %v1140, %v1138
    %v1175 = vpack.c.b16 %v1143, %v1141
    %v1176 = vpack.c.b16 %v1144, %v1142
    %1209 = vmatprep.subr.bf16.mxu0 %v1160
    %1210 = vmatpush1.bf16.msra.mxu0 %v1159
    %1211 = vmatprep.subr.bf16.mxu0 %v1158
    %1212 = vmatpush1.bf16.msra.mxu0 %v1157
    %1213 = vmatprep.subr.bf16.mxu0 %v1156
    %1214 = vmatpush1.bf16.msra.mxu0 %v1155
    %1215 = vmatprep.subr.bf16.mxu0 %v1154
    %1216 = vmatpush1.bf16.msra.mxu0 %v1153
    %1217 = vmatprep.subr.bf16.mxu0 %v1152
    %1218 = vmatpush1.bf16.msra.mxu0 %v1151
    %1219 = vmatprep.subr.bf16.mxu0 %v1150
    %1220 = vmatpush1.bf16.msra.mxu0 %v1149
    %1221 = vmatprep.subr.bf16.mxu0 %v1148
    %1222 = vmatpush1.bf16.msra.mxu0 %v1147
    %1223 = vmatprep.subr.bf16.mxu0 %v1146
    %1224 = vmatpush1.bf16.msra.mxu0 %v1145
    %1225 = vmatprep.subr.bf16.mxu0 %v1176
    %1226 = vmatpush2.bf16.msra.mxu0 %v1175
    %1227 = vmatprep.subr.bf16.mxu0 %v1174
    %1228 = vmatpush2.bf16.msra.mxu0 %v1173
    %1229 = vmatprep.subr.bf16.mxu0 %v1172
    %1230 = vmatpush2.bf16.msra.mxu0 %v1171
    %1231 = vmatprep.subr.bf16.mxu0 %v1170
    %1232 = vmatpush2.bf16.msra.mxu0 %v1169
    %1233 = vmatprep.subr.bf16.mxu0 %v1168
    %1234 = vmatpush2.bf16.msra.mxu0 %v1167
    %1235 = vmatprep.subr.bf16.mxu0 %v1166
    %1236 = vmatpush2.bf16.msra.mxu0 %v1165
    %1237 = vmatprep.subr.bf16.mxu0 %v1164
    %1238 = vmatpush2.bf16.msra.mxu0 %v1163
    %1239 = vmatprep.subr.bf16.mxu0 %v1162
    %1240 = vmatpush2.bf16.msra.mxu0 %v1161
    %1241 = vmatprep.mubr.bf16.mxu0 %v974
    %1242 = vmatmul.mubr.bf16.gmra.mxu0 %v973
    %v1243 = vpop.f32.mrf.mxu0
    %v1244 = vadd.f32 %v1042, %v1243
    %v1245 = vpop.f32.mrf.mxu0
    %v1246 = vadd.f32 %v1046, %v1245
    %v1247 = vpop.f32.mrf.mxu0
    %v1248 = vadd.f32 %v1042, %v1247
    %v1249 = vpop.f32.mrf.mxu0
    %v1250 = vadd.f32 %v1046, %v1249
    %1251 = vmatprep.mubr.bf16.mxu0 %v976
    %1252 = vmatmul.mubr.bf16.gmra.mxu0 %v975
    %v1253 = vpop.f32.mrf.mxu0
    %v1254 = vadd.f32 %v1042, %v1253
    %v1255 = vpop.f32.mrf.mxu0
    %v1256 = vadd.f32 %v1046, %v1255
    %v1257 = vpop.f32.mrf.mxu0
    %v1258 = vadd.f32 %v1042, %v1257
    %v1259 = vpop.f32.mrf.mxu0
    %v1260 = vadd.f32 %v1046, %v1259
    %1261 = vmatprep.mubr.bf16.mxu0 %v978
    %1262 = vmatmul.mubr.bf16.gmra.mxu0 %v977
    %v1263 = vpop.f32.mrf.mxu0
    %v1264 = vadd.f32 %v1042, %v1263
    %v1265 = vpop.f32.mrf.mxu0
    %v1266 = vadd.f32 %v1046, %v1265
    %v1267 = vpop.f32.mrf.mxu0
    %v1268 = vadd.f32 %v1042, %v1267
    %v1269 = vpop.f32.mrf.mxu0
    %v1270 = vadd.f32 %v1046, %v1269
    %1271 = vmatprep.mubr.bf16.mxu0 %v980
    %1272 = vmatmul.mubr.bf16.gmra.mxu0 %v979
    %v1273 = vpop.f32.mrf.mxu0
    %v1274 = vadd.f32 %v1042, %v1273
    %v1275 = vpop.f32.mrf.mxu0
    %v1276 = vadd.f32 %v1046, %v1275
    %v1277 = vpop.f32.mrf.mxu0
    %v1278 = vadd.f32 %v1042, %v1277
    %v1279 = vpop.f32.mrf.mxu0
    %v1280 = vadd.f32 %v1046, %v1279
    %1281 = vmatprep.mubr.bf16.mxu0 %v982
    %1282 = vmatmul.mubr.bf16.gmra.mxu0 %v981
    %v1283 = vpop.f32.mrf.mxu0
    %v1284 = vadd.f32 %v1042, %v1283
    %v1285 = vpop.f32.mrf.mxu0
    %v1286 = vadd.f32 %v1046, %v1285
    %v1287 = vpop.f32.mrf.mxu0
    %v1288 = vadd.f32 %v1042, %v1287
    %v1289 = vpop.f32.mrf.mxu0
    %v1290 = vadd.f32 %v1046, %v1289
    %1291 = vmatprep.mubr.bf16.mxu0 %v984
    %1292 = vmatmul.mubr.bf16.gmra.mxu0 %v983
    %v1293 = vpop.f32.mrf.mxu0
    %v1294 = vadd.f32 %v1042, %v1293
    %v1295 = vpop.f32.mrf.mxu0
    %v1296 = vadd.f32 %v1046, %v1295
    %v1297 = vpop.f32.mrf.mxu0
    %v1298 = vadd.f32 %v1042, %v1297
    %v1299 = vpop.f32.mrf.mxu0
    %v1300 = vadd.f32 %v1046, %v1299
    %1301 = vmatprep.mubr.bf16.mxu0 %v986
    %1302 = vmatmul.mubr.bf16.gmra.mxu0 %v985
    %v1303 = vpop.f32.mrf.mxu0
    %v1304 = vadd.f32 %v1042, %v1303
    %v1305 = vpop.f32.mrf.mxu0
    %v1306 = vadd.f32 %v1046, %v1305
    %v1307 = vpop.f32.mrf.mxu0
    %v1308 = vadd.f32 %v1042, %v1307
    %v1309 = vpop.f32.mrf.mxu0
    %v1310 = vadd.f32 %v1046, %v1309
    %1311 = vmatprep.mubr.bf16.mxu0 %v988
    %1312 = vmatmul.mubr.bf16.gmra.mxu0 %v987
    %v1313 = vpop.f32.mrf.mxu0
    %v1314 = vadd.f32 %v1042, %v1313
    %v1315 = vpop.f32.mrf.mxu0
    %v1316 = vadd.f32 %v1046, %v1315
    %v1317 = vpop.f32.mrf.mxu0
    %v1318 = vadd.f32 %v1042, %v1317
    %v1319 = vpop.f32.mrf.mxu0
    %v1320 = vadd.f32 %v1046, %v1319
    %1321 = vmatprep.mubr.bf16.mxu0 %v990
    %1322 = vmatmul.mubr.bf16.gmra.mxu0 %v989
    %v1323 = vpop.f32.mrf.mxu0
    %v1324 = vadd.f32 %v1042, %v1323
    %v1325 = vpop.f32.mrf.mxu0
    %v1326 = vadd.f32 %v1046, %v1325
    %v1327 = vpop.f32.mrf.mxu0
    %v1328 = vadd.f32 %v1042, %v1327
    %v1329 = vpop.f32.mrf.mxu0
    %v1330 = vadd.f32 %v1046, %v1329
    %1331 = vmatprep.mubr.bf16.mxu0 %v992
    %1332 = vmatmul.mubr.bf16.gmra.mxu0 %v991
    %v1333 = vpop.f32.mrf.mxu0
    %v1334 = vadd.f32 %v1042, %v1333
    %v1335 = vpop.f32.mrf.mxu0
    %v1336 = vadd.f32 %v1046, %v1335
    %v1337 = vpop.f32.mrf.mxu0
    %v1338 = vadd.f32 %v1042, %v1337
    %v1339 = vpop.f32.mrf.mxu0
    %v1340 = vadd.f32 %v1046, %v1339
    %1341 = vmatprep.mubr.bf16.mxu0 %v994
    %1342 = vmatmul.mubr.bf16.gmra.mxu0 %v993
    %v1343 = vpop.f32.mrf.mxu0
    %v1344 = vadd.f32 %v1042, %v1343
    %v1345 = vpop.f32.mrf.mxu0
    %v1346 = vadd.f32 %v1046, %v1345
    %v1347 = vpop.f32.mrf.mxu0
    %v1348 = vadd.f32 %v1042, %v1347
    %v1349 = vpop.f32.mrf.mxu0
    %v1350 = vadd.f32 %v1046, %v1349
    %1351 = vmatprep.mubr.bf16.mxu0 %v996
    %1352 = vmatmul.mubr.bf16.gmra.mxu0 %v995
    %v1353 = vpop.f32.mrf.mxu0
    %v1354 = vadd.f32 %v1042, %v1353
    %v1355 = vpop.f32.mrf.mxu0
    %v1356 = vadd.f32 %v1046, %v1355
    %v1357 = vpop.f32.mrf.mxu0
    %v1358 = vadd.f32 %v1042, %v1357
    %v1359 = vpop.f32.mrf.mxu0
    %v1360 = vadd.f32 %v1046, %v1359
    %1361 = vmatprep.mubr.bf16.mxu0 %v998
    %1362 = vmatmul.mubr.bf16.gmra.mxu0 %v997
    %v1363 = vpop.f32.mrf.mxu0
    %v1364 = vadd.f32 %v1042, %v1363
    %v1365 = vpop.f32.mrf.mxu0
    %v1366 = vadd.f32 %v1046, %v1365
    %v1367 = vpop.f32.mrf.mxu0
    %v1368 = vadd.f32 %v1042, %v1367
    %v1369 = vpop.f32.mrf.mxu0
    %v1370 = vadd.f32 %v1046, %v1369
    %1371 = vmatprep.mubr.bf16.mxu0 %v1000
    %1372 = vmatmul.mubr.bf16.gmra.mxu0 %v999
    %v1373 = vpop.f32.mrf.mxu0
    %v1374 = vadd.f32 %v1042, %v1373
    %v1375 = vpop.f32.mrf.mxu0
    %v1376 = vadd.f32 %v1046, %v1375
    %v1377 = vpop.f32.mrf.mxu0
    %v1378 = vadd.f32 %v1042, %v1377
    %v1379 = vpop.f32.mrf.mxu0
    %v1380 = vadd.f32 %v1046, %v1379
    %1381 = vmatprep.mubr.bf16.mxu0 %v1002
    %1382 = vmatmul.mubr.bf16.gmra.mxu0 %v1001
    %v1383 = vpop.f32.mrf.mxu0
    %v1384 = vadd.f32 %v1042, %v1383
    %v1385 = vpop.f32.mrf.mxu0
    %v1386 = vadd.f32 %v1046, %v1385
    %v1387 = vpop.f32.mrf.mxu0
    %v1388 = vadd.f32 %v1042, %v1387
    %v1389 = vpop.f32.mrf.mxu0
    %v1390 = vadd.f32 %v1046, %v1389
    %1391 = vmatprep.mubr.bf16.mxu0 %v1004
    %1392 = vmatmul.mubr.bf16.gmra.mxu0 %v1003
    %v1393 = vpop.f32.mrf.mxu0
    %v1394 = vadd.f32 %v1042, %v1393
    %v1395 = vpop.f32.mrf.mxu0
    %v1396 = vadd.f32 %v1046, %v1395
    %v1397 = vpop.f32.mrf.mxu0
    %v1398 = vadd.f32 %v1042, %v1397
    %v1399 = vpop.f32.mrf.mxu0
    %v1400 = vadd.f32 %v1046, %v1399
    %1401 = vdwg.mxu0
    %v1402 = vmax.f32 %v1244, 0.0
    %v1403 = vmax.f32 %v1246, 0.0
    %v1404 = vmax.f32 %v1248, 0.0
    %v1405 = vmax.f32 %v1250, 0.0
    %v1406 = vmax.f32 %v1254, 0.0
    %v1407 = vmax.f32 %v1256, 0.0
    %v1408 = vmax.f32 %v1258, 0.0
    %v1409 = vmax.f32 %v1260, 0.0
    %v1410 = vmax.f32 %v1264, 0.0
    %v1411 = vmax.f32 %v1266, 0.0
    %v1412 = vmax.f32 %v1268, 0.0
    %v1413 = vmax.f32 %v1270, 0.0
    %v1414 = vmax.f32 %v1274, 0.0
    %v1415 = vmax.f32 %v1276, 0.0
    %v1416 = vmax.f32 %v1278, 0.0
    %v1417 = vmax.f32 %v1280, 0.0
    %v1418 = vmax.f32 %v1284, 0.0
    %v1419 = vmax.f32 %v1286, 0.0
    %v1420 = vmax.f32 %v1288, 0.0
    %v1421 = vmax.f32 %v1290, 0.0
    %v1422 = vmax.f32 %v1294, 0.0
    %v1423 = vmax.f32 %v1296, 0.0
    %v1424 = vmax.f32 %v1298, 0.0
    %v1425 = vmax.f32 %v1300, 0.0
    %v1426 = vmax.f32 %v1304, 0.0
    %v1427 = vmax.f32 %v1306, 0.0
    %v1428 = vmax.f32 %v1308, 0.0
    %v1429 = vmax.f32 %v1310, 0.0
    %v1430 = vmax.f32 %v1314, 0.0
    %v1431 = vmax.f32 %v1316, 0.0
    %v1432 = vmax.f32 %v1318, 0.0
    %v1433 = vmax.f32 %v1320, 0.0
    %v1434 = vmax.f32 %v1324, 0.0
    %v1435 = vmax.f32 %v1326, 0.0
    %v1436 = vmax.f32 %v1328, 0.0
    %v1437 = vmax.f32 %v1330, 0.0
    %v1438 = vmax.f32 %v1334, 0.0
    %v1439 = vmax.f32 %v1336, 0.0
    %v1440 = vmax.f32 %v1338, 0.0
    %v1441 = vmax.f32 %v1340, 0.0
    %v1442 = vmax.f32 %v1344, 0.0
    %v1443 = vmax.f32 %v1346, 0.0
    %v1444 = vmax.f32 %v1348, 0.0
    %v1445 = vmax.f32 %v1350, 0.0
    %v1446 = vmax.f32 %v1354, 0.0
    %v1447 = vmax.f32 %v1356, 0.0
    %v1448 = vmax.f32 %v1358, 0.0
    %v1449 = vmax.f32 %v1360, 0.0
    %v1450 = vmax.f32 %v1364, 0.0
    %v1451 = vmax.f32 %v1366, 0.0
    %v1452 = vmax.f32 %v1368, 0.0
    %v1453 = vmax.f32 %v1370, 0.0
    %v1454 = vmax.f32 %v1374, 0.0
    %v1455 = vmax.f32 %v1376, 0.0
    %v1456 = vmax.f32 %v1378, 0.0
    %v1457 = vmax.f32 %v1380, 0.0
    %v1458 = vmax.f32 %v1384, 0.0
    %v1459 = vmax.f32 %v1386, 0.0
    %v1460 = vmax.f32 %v1388, 0.0
    %v1461 = vmax.f32 %v1390, 0.0
    %v1462 = vmax.f32 %v1394, 0.0
    %v1463 = vmax.f32 %v1396, 0.0
    %v1464 = vmax.f32 %v1398, 0.0
    %v1465 = vmax.f32 %v1400, 0.0
    %v1466 = vpack.c.bf16 %v1404, %v1402
    %v1467 = vpack.c.bf16 %v1405, %v1403
    %v1468 = vpack.c.bf16 %v1408, %v1406
    %v1469 = vpack.c.bf16 %v1409, %v1407
    %v1470 = vpack.c.bf16 %v1412, %v1410
    %v1471 = vpack.c.bf16 %v1413, %v1411
    %v1472 = vpack.c.bf16 %v1416, %v1414
    %v1473 = vpack.c.bf16 %v1417, %v1415
    %v1474 = vpack.c.bf16 %v1420, %v1418
    %v1475 = vpack.c.bf16 %v1421, %v1419
    %v1476 = vpack.c.bf16 %v1424, %v1422
    %v1477 = vpack.c.bf16 %v1425, %v1423
    %v1478 = vpack.c.bf16 %v1428, %v1426
    %v1479 = vpack.c.bf16 %v1429, %v1427
    %v1480 = vpack.c.bf16 %v1432, %v1430
    %v1481 = vpack.c.bf16 %v1433, %v1431
    %v1482 = vpack.c.bf16 %v1436, %v1434
    %v1483 = vpack.c.bf16 %v1437, %v1435
    %v1484 = vpack.c.bf16 %v1440, %v1438
    %v1485 = vpack.c.bf16 %v1441, %v1439
    %v1486 = vpack.c.bf16 %v1444, %v1442
    %v1487 = vpack.c.bf16 %v1445, %v1443
    %v1488 = vpack.c.bf16 %v1448, %v1446
    %v1489 = vpack.c.bf16 %v1449, %v1447
    %v1490 = vpack.c.bf16 %v1452, %v1450
    %v1491 = vpack.c.bf16 %v1453, %v1451
    %v1492 = vpack.c.bf16 %v1456, %v1454
    %v1493 = vpack.c.bf16 %v1457, %v1455
    %v1494 = vpack.c.bf16 %v1460, %v1458
    %v1495 = vpack.c.bf16 %v1461, %v1459
    %v1496 = vpack.c.bf16 %v1464, %v1462
    %v1497 = vpack.c.bf16 %v1465, %v1463
    %v1498 = vld [vmem:[#allocation5] sm:$0xff]
    %v1499 = vld [vmem:[#allocation5 + $0x8] sm:$0xff]
    %v1500 = vld [vmem:[#allocation5 + $0x10] sm:$0xff]
    %v1501 = vld [vmem:[#allocation5 + $0x18] sm:$0xff]
    %v1502 = vld [vmem:[#allocation5 + $0x20] sm:$0xff]
    %v1503 = vld [vmem:[#allocation5 + $0x28] sm:$0xff]
    %v1504 = vld [vmem:[#allocation5 + $0x30] sm:$0xff]
    %v1505 = vld [vmem:[#allocation5 + $0x38] sm:$0xff]
    %v1506 = vld [vmem:[#allocation5 + $0x40] sm:$0xff]
    %v1507 = vld [vmem:[#allocation5 + $0x48] sm:$0xff]
    %v1508 = vld [vmem:[#allocation5 + $0x50] sm:$0xff]
    %v1509 = vld [vmem:[#allocation5 + $0x58] sm:$0xff]
    %v1510 = vld [vmem:[#allocation5 + $0x60] sm:$0xff]
    %v1511 = vld [vmem:[#allocation5 + $0x68] sm:$0xff]
    %v1512 = vld [vmem:[#allocation5 + $0x70] sm:$0xff]
    %v1513 = vld [vmem:[#allocation5 + $0x78] sm:$0xff]
    %v1514 = vld [vmem:[#allocation5 + $0x80] sm:$0xff]
    %v1515 = vld [vmem:[#allocation5 + $0x88] sm:$0xff]
    %v1516 = vld [vmem:[#allocation5 + $0x90] sm:$0xff]
    %v1517 = vld [vmem:[#allocation5 + $0x98] sm:$0xff]
    %v1518 = vld [vmem:[#allocation5 + $0xa0] sm:$0xff]
    %v1519 = vld [vmem:[#allocation5 + $0xa8] sm:$0xff]
    %v1520 = vld [vmem:[#allocation5 + $0xb0] sm:$0xff]
    %v1521 = vld [vmem:[#allocation5 + $0xb8] sm:$0xff]
    %v1522 = vld [vmem:[#allocation5 + $0xc0] sm:$0xff]
    %v1523 = vld [vmem:[#allocation5 + $0xc8] sm:$0xff]
    %v1524 = vld [vmem:[#allocation5 + $0xd0] sm:$0xff]
    %v1525 = vld [vmem:[#allocation5 + $0xd8] sm:$0xff]
    %v1526 = vld [vmem:[#allocation5 + $0xe0] sm:$0xff]
    %v1527 = vld [vmem:[#allocation5 + $0xe8] sm:$0xff]
    %v1528 = vld [vmem:[#allocation5 + $0xf0] sm:$0xff]
    %v1529 = vld [vmem:[#allocation5 + $0xf8] sm:$0xff]
    %v1530 = vld [vmem:[%s8] sm:$0x3]
    %v1532 = vlaneseq
    %v1533 = vshrl.u32 %v1532, 7
    %v1534 = vsub.s32 0, %v1533
    %v1535 = vrot.slane %v1530, %v1534
    %v1536 = vlaneseq
    %v1537 = vshrl.u32 %v1536, 7
    %v1538 = vsub.s32 1, %v1537
    %v1539 = vrot.slane %v1530, %v1538
    %v1574 = vunpack.c.l.b16 %v1498
    %v1575 = vunpack.c.h.b16 %v1498
    %v1576 = vunpack.c.l.b16 %v1499
    %v1577 = vunpack.c.h.b16 %v1499
    %v1578 = vunpack.c.l.b16 %v1500
    %v1579 = vunpack.c.h.b16 %v1500
    %v1580 = vunpack.c.l.b16 %v1501
    %v1581 = vunpack.c.h.b16 %v1501
    %v1582 = vunpack.c.l.b16 %v1502
    %v1583 = vunpack.c.h.b16 %v1502
    %v1584 = vunpack.c.l.b16 %v1503
    %v1585 = vunpack.c.h.b16 %v1503
    %v1586 = vunpack.c.l.b16 %v1504
    %v1587 = vunpack.c.h.b16 %v1504
    %v1588 = vunpack.c.l.b16 %v1505
    %v1589 = vunpack.c.h.b16 %v1505
    %v1590 = vunpack.c.l.b16 %v1506
    %v1591 = vunpack.c.h.b16 %v1506
    %v1592 = vunpack.c.l.b16 %v1507
    %v1593 = vunpack.c.h.b16 %v1507
    %v1594 = vunpack.c.l.b16 %v1508
    %v1595 = vunpack.c.h.b16 %v1508
    %v1596 = vunpack.c.l.b16 %v1509
    %v1597 = vunpack.c.h.b16 %v1509
    %v1598 = vunpack.c.l.b16 %v1510
    %v1599 = vunpack.c.h.b16 %v1510
    %v1600 = vunpack.c.l.b16 %v1511
    %v1601 = vunpack.c.h.b16 %v1511
    %v1602 = vunpack.c.l.b16 %v1512
    %v1603 = vunpack.c.h.b16 %v1512
    %v1604 = vunpack.c.l.b16 %v1513
    %v1605 = vunpack.c.h.b16 %v1513
    %v1606 = vunpack.c.l.b16 %v1514
    %v1607 = vunpack.c.h.b16 %v1514
    %v1608 = vunpack.c.l.b16 %v1515
    %v1609 = vunpack.c.h.b16 %v1515
    %v1610 = vunpack.c.l.b16 %v1516
    %v1611 = vunpack.c.h.b16 %v1516
    %v1612 = vunpack.c.l.b16 %v1517
    %v1613 = vunpack.c.h.b16 %v1517
    %v1614 = vunpack.c.l.b16 %v1518
    %v1615 = vunpack.c.h.b16 %v1518
    %v1616 = vunpack.c.l.b16 %v1519
    %v1617 = vunpack.c.h.b16 %v1519
    %v1618 = vunpack.c.l.b16 %v1520
    %v1619 = vunpack.c.h.b16 %v1520
    %v1620 = vunpack.c.l.b16 %v1521
    %v1621 = vunpack.c.h.b16 %v1521
    %v1622 = vunpack.c.l.b16 %v1522
    %v1623 = vunpack.c.h.b16 %v1522
    %v1624 = vunpack.c.l.b16 %v1523
    %v1625 = vunpack.c.h.b16 %v1523
    %v1626 = vunpack.c.l.b16 %v1524
    %v1627 = vunpack.c.h.b16 %v1524
    %v1628 = vunpack.c.l.b16 %v1525
    %v1629 = vunpack.c.h.b16 %v1525
    %v1630 = vunpack.c.l.b16 %v1526
    %v1631 = vunpack.c.h.b16 %v1526
    %v1632 = vunpack.c.l.b16 %v1527
    %v1633 = vunpack.c.h.b16 %v1527
    %v1634 = vunpack.c.l.b16 %v1528
    %v1635 = vunpack.c.h.b16 %v1528
    %v1636 = vunpack.c.l.b16 %v1529
    %v1637 = vunpack.c.h.b16 %v1529
    %v1638 = vpack.c.b16 %v1576, %v1574
    %v1639 = vpack.c.b16 %v1577, %v1575
    %v1640 = vpack.c.b16 %v1580, %v1578
    %v1641 = vpack.c.b16 %v1581, %v1579
    %v1642 = vpack.c.b16 %v1584, %v1582
    %v1643 = vpack.c.b16 %v1585, %v1583
    %v1644 = vpack.c.b16 %v1588, %v1586
    %v1645 = vpack.c.b16 %v1589, %v1587
    %v1646 = vpack.c.b16 %v1592, %v1590
    %v1647 = vpack.c.b16 %v1593, %v1591
    %v1648 = vpack.c.b16 %v1596, %v1594
    %v1649 = vpack.c.b16 %v1597, %v1595
    %v1650 = vpack.c.b16 %v1600, %v1598
    %v1651 = vpack.c.b16 %v1601, %v1599
    %v1652 = vpack.c.b16 %v1604, %v1602
    %v1653 = vpack.c.b16 %v1605, %v1603
    %v1654 = vpack.c.b16 %v1608, %v1606
    %v1655 = vpack.c.b16 %v1609, %v1607
    %v1656 = vpack.c.b16 %v1612, %v1610
    %v1657 = vpack.c.b16 %v1613, %v1611
    %v1658 = vpack.c.b16 %v1616, %v1614
    %v1659 = vpack.c.b16 %v1617, %v1615
    %v1660 = vpack.c.b16 %v1620, %v1618
    %v1661 = vpack.c.b16 %v1621, %v1619
    %v1662 = vpack.c.b16 %v1624, %v1622
    %v1663 = vpack.c.b16 %v1625, %v1623
    %v1664 = vpack.c.b16 %v1628, %v1626
    %v1665 = vpack.c.b16 %v1629, %v1627
    %v1666 = vpack.c.b16 %v1632, %v1630
    %v1667 = vpack.c.b16 %v1633, %v1631
    %v1668 = vpack.c.b16 %v1636, %v1634
    %v1669 = vpack.c.b16 %v1637, %v1635
    %1702 = vmatprep.subr.bf16.mxu0 %v1653
    %1703 = vmatpush1.bf16.msra.mxu0 %v1652
    %1704 = vmatprep.subr.bf16.mxu0 %v1651
    %1705 = vmatpush1.bf16.msra.mxu0 %v1650
    %1706 = vmatprep.subr.bf16.mxu0 %v1649
    %1707 = vmatpush1.bf16.msra.mxu0 %v1648
    %1708 = vmatprep.subr.bf16.mxu0 %v1647
    %1709 = vmatpush1.bf16.msra.mxu0 %v1646
    %1710 = vmatprep.subr.bf16.mxu0 %v1645
    %1711 = vmatpush1.bf16.msra.mxu0 %v1644
    %1712 = vmatprep.subr.bf16.mxu0 %v1643
    %1713 = vmatpush1.bf16.msra.mxu0 %v1642
    %1714 = vmatprep.subr.bf16.mxu0 %v1641
    %1715 = vmatpush1.bf16.msra.mxu0 %v1640
    %1716 = vmatprep.subr.bf16.mxu0 %v1639
    %1717 = vmatpush1.bf16.msra.mxu0 %v1638
    %1718 = vmatprep.subr.bf16.mxu0 %v1669
    %1719 = vmatpush2.bf16.msra.mxu0 %v1668
    %1720 = vmatprep.subr.bf16.mxu0 %v1667
    %1721 = vmatpush2.bf16.msra.mxu0 %v1666
    %1722 = vmatprep.subr.bf16.mxu0 %v1665
    %1723 = vmatpush2.bf16.msra.mxu0 %v1664
    %1724 = vmatprep.subr.bf16.mxu0 %v1663
    %1725 = vmatpush2.bf16.msra.mxu0 %v1662
    %1726 = vmatprep.subr.bf16.mxu0 %v1661
    %1727 = vmatpush2.bf16.msra.mxu0 %v1660
    %1728 = vmatprep.subr.bf16.mxu0 %v1659
    %1729 = vmatpush2.bf16.msra.mxu0 %v1658
    %1730 = vmatprep.subr.bf16.mxu0 %v1657
    %1731 = vmatpush2.bf16.msra.mxu0 %v1656
    %1732 = vmatprep.subr.bf16.mxu0 %v1655
    %1733 = vmatpush2.bf16.msra.mxu0 %v1654
    %1734 = vmatprep.mubr.bf16.mxu0 %v1467
    %1735 = vmatmul.mubr.bf16.gmra.mxu0 %v1466
    %v1736 = vpop.f32.mrf.mxu0
    %v1737 = vadd.f32 %v1535, %v1736
    %v1738 = vpop.f32.mrf.mxu0
    %v1739 = vadd.f32 %v1539, %v1738
    %v1740 = vpop.f32.mrf.mxu0
    %v1741 = vadd.f32 %v1535, %v1740
    %v1742 = vpop.f32.mrf.mxu0
    %v1743 = vadd.f32 %v1539, %v1742
    %1744 = vmatprep.mubr.bf16.mxu0 %v1469
    %1745 = vmatmul.mubr.bf16.gmra.mxu0 %v1468
    %v1746 = vpop.f32.mrf.mxu0
    %v1747 = vadd.f32 %v1535, %v1746
    %v1748 = vpop.f32.mrf.mxu0
    %v1749 = vadd.f32 %v1539, %v1748
    %v1750 = vpop.f32.mrf.mxu0
    %v1751 = vadd.f32 %v1535, %v1750
    %v1752 = vpop.f32.mrf.mxu0
    %v1753 = vadd.f32 %v1539, %v1752
    %1754 = vmatprep.mubr.bf16.mxu0 %v1471
    %1755 = vmatmul.mubr.bf16.gmra.mxu0 %v1470
    %v1756 = vpop.f32.mrf.mxu0
    %v1757 = vadd.f32 %v1535, %v1756
    %v1758 = vpop.f32.mrf.mxu0
    %v1759 = vadd.f32 %v1539, %v1758
    %v1760 = vpop.f32.mrf.mxu0
    %v1761 = vadd.f32 %v1535, %v1760
    %v1762 = vpop.f32.mrf.mxu0
    %v1763 = vadd.f32 %v1539, %v1762
    %1764 = vmatprep.mubr.bf16.mxu0 %v1473
    %1765 = vmatmul.mubr.bf16.gmra.mxu0 %v1472
    %v1766 = vpop.f32.mrf.mxu0
    %v1767 = vadd.f32 %v1535, %v1766
    %v1768 = vpop.f32.mrf.mxu0
    %v1769 = vadd.f32 %v1539, %v1768
    %v1770 = vpop.f32.mrf.mxu0
    %v1771 = vadd.f32 %v1535, %v1770
    %v1772 = vpop.f32.mrf.mxu0
    %v1773 = vadd.f32 %v1539, %v1772
    %1774 = vmatprep.mubr.bf16.mxu0 %v1475
    %1775 = vmatmul.mubr.bf16.gmra.mxu0 %v1474
    %v1776 = vpop.f32.mrf.mxu0
    %v1777 = vadd.f32 %v1535, %v1776
    %v1778 = vpop.f32.mrf.mxu0
    %v1779 = vadd.f32 %v1539, %v1778
    %v1780 = vpop.f32.mrf.mxu0
    %v1781 = vadd.f32 %v1535, %v1780
    %v1782 = vpop.f32.mrf.mxu0
    %v1783 = vadd.f32 %v1539, %v1782
    %1784 = vmatprep.mubr.bf16.mxu0 %v1477
    %1785 = vmatmul.mubr.bf16.gmra.mxu0 %v1476
    %v1786 = vpop.f32.mrf.mxu0
    %v1787 = vadd.f32 %v1535, %v1786
    %v1788 = vpop.f32.mrf.mxu0
    %v1789 = vadd.f32 %v1539, %v1788
    %v1790 = vpop.f32.mrf.mxu0
    %v1791 = vadd.f32 %v1535, %v1790
    %v1792 = vpop.f32.mrf.mxu0
    %v1793 = vadd.f32 %v1539, %v1792
    %1794 = vmatprep.mubr.bf16.mxu0 %v1479
    %1795 = vmatmul.mubr.bf16.gmra.mxu0 %v1478
    %v1796 = vpop.f32.mrf.mxu0
    %v1797 = vadd.f32 %v1535, %v1796
    %v1798 = vpop.f32.mrf.mxu0
    %v1799 = vadd.f32 %v1539, %v1798
    %v1800 = vpop.f32.mrf.mxu0
    %v1801 = vadd.f32 %v1535, %v1800
    %v1802 = vpop.f32.mrf.mxu0
    %v1803 = vadd.f32 %v1539, %v1802
    %1804 = vmatprep.mubr.bf16.mxu0 %v1481
    %1805 = vmatmul.mubr.bf16.gmra.mxu0 %v1480
    %v1806 = vpop.f32.mrf.mxu0
    %v1807 = vadd.f32 %v1535, %v1806
    %v1808 = vpop.f32.mrf.mxu0
    %v1809 = vadd.f32 %v1539, %v1808
    %v1810 = vpop.f32.mrf.mxu0
    %v1811 = vadd.f32 %v1535, %v1810
    %v1812 = vpop.f32.mrf.mxu0
    %v1813 = vadd.f32 %v1539, %v1812
    %1814 = vmatprep.mubr.bf16.mxu0 %v1483
    %1815 = vmatmul.mubr.bf16.gmra.mxu0 %v1482
    %v1816 = vpop.f32.mrf.mxu0
    %v1817 = vadd.f32 %v1535, %v1816
    %v1818 = vpop.f32.mrf.mxu0
    %v1819 = vadd.f32 %v1539, %v1818
    %v1820 = vpop.f32.mrf.mxu0
    %v1821 = vadd.f32 %v1535, %v1820
    %v1822 = vpop.f32.mrf.mxu0
    %v1823 = vadd.f32 %v1539, %v1822
    %1824 = vmatprep.mubr.bf16.mxu0 %v1485
    %1825 = vmatmul.mubr.bf16.gmra.mxu0 %v1484
    %v1826 = vpop.f32.mrf.mxu0
    %v1827 = vadd.f32 %v1535, %v1826
    %v1828 = vpop.f32.mrf.mxu0
    %v1829 = vadd.f32 %v1539, %v1828
    %v1830 = vpop.f32.mrf.mxu0
    %v1831 = vadd.f32 %v1535, %v1830
    %v1832 = vpop.f32.mrf.mxu0
    %v1833 = vadd.f32 %v1539, %v1832
    %1834 = vmatprep.mubr.bf16.mxu0 %v1487
    %1835 = vmatmul.mubr.bf16.gmra.mxu0 %v1486
    %v1836 = vpop.f32.mrf.mxu0
    %v1837 = vadd.f32 %v1535, %v1836
    %v1838 = vpop.f32.mrf.mxu0
    %v1839 = vadd.f32 %v1539, %v1838
    %v1840 = vpop.f32.mrf.mxu0
    %v1841 = vadd.f32 %v1535, %v1840
    %v1842 = vpop.f32.mrf.mxu0
    %v1843 = vadd.f32 %v1539, %v1842
    %1844 = vmatprep.mubr.bf16.mxu0 %v1489
    %1845 = vmatmul.mubr.bf16.gmra.mxu0 %v1488
    %v1846 = vpop.f32.mrf.mxu0
    %v1847 = vadd.f32 %v1535, %v1846
    %v1848 = vpop.f32.mrf.mxu0
    %v1849 = vadd.f32 %v1539, %v1848
    %v1850 = vpop.f32.mrf.mxu0
    %v1851 = vadd.f32 %v1535, %v1850
    %v1852 = vpop.f32.mrf.mxu0
    %v1853 = vadd.f32 %v1539, %v1852
    %1854 = vmatprep.mubr.bf16.mxu0 %v1491
    %1855 = vmatmul.mubr.bf16.gmra.mxu0 %v1490
    %v1856 = vpop.f32.mrf.mxu0
    %v1857 = vadd.f32 %v1535, %v1856
    %v1858 = vpop.f32.mrf.mxu0
    %v1859 = vadd.f32 %v1539, %v1858
    %v1860 = vpop.f32.mrf.mxu0
    %v1861 = vadd.f32 %v1535, %v1860
    %v1862 = vpop.f32.mrf.mxu0
    %v1863 = vadd.f32 %v1539, %v1862
    %1864 = vmatprep.mubr.bf16.mxu0 %v1493
    %1865 = vmatmul.mubr.bf16.gmra.mxu0 %v1492
    %v1866 = vpop.f32.mrf.mxu0
    %v1867 = vadd.f32 %v1535, %v1866
    %v1868 = vpop.f32.mrf.mxu0
    %v1869 = vadd.f32 %v1539, %v1868
    %v1870 = vpop.f32.mrf.mxu0
    %v1871 = vadd.f32 %v1535, %v1870
    %v1872 = vpop.f32.mrf.mxu0
    %v1873 = vadd.f32 %v1539, %v1872
    %1874 = vmatprep.mubr.bf16.mxu0 %v1495
    %1875 = vmatmul.mubr.bf16.gmra.mxu0 %v1494
    %v1876 = vpop.f32.mrf.mxu0
    %v1877 = vadd.f32 %v1535, %v1876
    %v1878 = vpop.f32.mrf.mxu0
    %v1879 = vadd.f32 %v1539, %v1878
    %v1880 = vpop.f32.mrf.mxu0
    %v1881 = vadd.f32 %v1535, %v1880
    %v1882 = vpop.f32.mrf.mxu0
    %v1883 = vadd.f32 %v1539, %v1882
    %1884 = vmatprep.mubr.bf16.mxu0 %v1497
    %1885 = vmatmul.mubr.bf16.gmra.mxu0 %v1496
    %v1886 = vpop.f32.mrf.mxu0
    %v1887 = vadd.f32 %v1535, %v1886
    %v1888 = vpop.f32.mrf.mxu0
    %v1889 = vadd.f32 %v1539, %v1888
    %v1890 = vpop.f32.mrf.mxu0
    %v1891 = vadd.f32 %v1535, %v1890
    %v1892 = vpop.f32.mrf.mxu0
    %v1893 = vadd.f32 %v1539, %v1892
    %1894 = vdwg.mxu0
    %v1895 = vmax.f32 %v1737, 0.0
    %v1896 = vmax.f32 %v1739, 0.0
    %v1897 = vmax.f32 %v1741, 0.0
    %v1898 = vmax.f32 %v1743, 0.0
    %v1899 = vmax.f32 %v1747, 0.0
    %v1900 = vmax.f32 %v1749, 0.0
    %v1901 = vmax.f32 %v1751, 0.0
    %v1902 = vmax.f32 %v1753, 0.0
    %v1903 = vmax.f32 %v1757, 0.0
    %v1904 = vmax.f32 %v1759, 0.0
    %v1905 = vmax.f32 %v1761, 0.0
    %v1906 = vmax.f32 %v1763, 0.0
    %v1907 = vmax.f32 %v1767, 0.0
    %v1908 = vmax.f32 %v1769, 0.0
    %v1909 = vmax.f32 %v1771, 0.0
    %v1910 = vmax.f32 %v1773, 0.0
    %v1911 = vmax.f32 %v1777, 0.0
    %v1912 = vmax.f32 %v1779, 0.0
    %v1913 = vmax.f32 %v1781, 0.0
    %v1914 = vmax.f32 %v1783, 0.0
    %v1915 = vmax.f32 %v1787, 0.0
    %v1916 = vmax.f32 %v1789, 0.0
    %v1917 = vmax.f32 %v1791, 0.0
    %v1918 = vmax.f32 %v1793, 0.0
    %v1919 = vmax.f32 %v1797, 0.0
    %v1920 = vmax.f32 %v1799, 0.0
    %v1921 = vmax.f32 %v1801, 0.0
    %v1922 = vmax.f32 %v1803, 0.0
    %v1923 = vmax.f32 %v1807, 0.0
    %v1924 = vmax.f32 %v1809, 0.0
    %v1925 = vmax.f32 %v1811, 0.0
    %v1926 = vmax.f32 %v1813, 0.0
    %v1927 = vmax.f32 %v1817, 0.0
    %v1928 = vmax.f32 %v1819, 0.0
    %v1929 = vmax.f32 %v1821, 0.0
    %v1930 = vmax.f32 %v1823, 0.0
    %v1931 = vmax.f32 %v1827, 0.0
    %v1932 = vmax.f32 %v1829, 0.0
    %v1933 = vmax.f32 %v1831, 0.0
    %v1934 = vmax.f32 %v1833, 0.0
    %v1935 = vmax.f32 %v1837, 0.0
    %v1936 = vmax.f32 %v1839, 0.0
    %v1937 = vmax.f32 %v1841, 0.0
    %v1938 = vmax.f32 %v1843, 0.0
    %v1939 = vmax.f32 %v1847, 0.0
    %v1940 = vmax.f32 %v1849, 0.0
    %v1941 = vmax.f32 %v1851, 0.0
    %v1942 = vmax.f32 %v1853, 0.0
    %v1943 = vmax.f32 %v1857, 0.0
    %v1944 = vmax.f32 %v1859, 0.0
    %v1945 = vmax.f32 %v1861, 0.0
    %v1946 = vmax.f32 %v1863, 0.0
    %v1947 = vmax.f32 %v1867, 0.0
    %v1948 = vmax.f32 %v1869, 0.0
    %v1949 = vmax.f32 %v1871, 0.0
    %v1950 = vmax.f32 %v1873, 0.0
    %v1951 = vmax.f32 %v1877, 0.0
    %v1952 = vmax.f32 %v1879, 0.0
    %v1953 = vmax.f32 %v1881, 0.0
    %v1954 = vmax.f32 %v1883, 0.0
    %v1955 = vmax.f32 %v1887, 0.0
    %v1956 = vmax.f32 %v1889, 0.0
    %v1957 = vmax.f32 %v1891, 0.0
    %v1958 = vmax.f32 %v1893, 0.0
    %v1959 = vpack.c.bf16 %v1897, %v1895
    %v1960 = vpack.c.bf16 %v1898, %v1896
    %v1961 = vpack.c.bf16 %v1901, %v1899
    %v1962 = vpack.c.bf16 %v1902, %v1900
    %v1963 = vpack.c.bf16 %v1905, %v1903
    %v1964 = vpack.c.bf16 %v1906, %v1904
    %v1965 = vpack.c.bf16 %v1909, %v1907
    %v1966 = vpack.c.bf16 %v1910, %v1908
    %v1967 = vpack.c.bf16 %v1913, %v1911
    %v1968 = vpack.c.bf16 %v1914, %v1912
    %v1969 = vpack.c.bf16 %v1917, %v1915
    %v1970 = vpack.c.bf16 %v1918, %v1916
    %v1971 = vpack.c.bf16 %v1921, %v1919
    %v1972 = vpack.c.bf16 %v1922, %v1920
    %v1973 = vpack.c.bf16 %v1925, %v1923
    %v1974 = vpack.c.bf16 %v1926, %v1924
    %v1975 = vpack.c.bf16 %v1929, %v1927
    %v1976 = vpack.c.bf16 %v1930, %v1928
    %v1977 = vpack.c.bf16 %v1933, %v1931
    %v1978 = vpack.c.bf16 %v1934, %v1932
    %v1979 = vpack.c.bf16 %v1937, %v1935
    %v1980 = vpack.c.bf16 %v1938, %v1936
    %v1981 = vpack.c.bf16 %v1941, %v1939
    %v1982 = vpack.c.bf16 %v1942, %v1940
    %v1983 = vpack.c.bf16 %v1945, %v1943
    %v1984 = vpack.c.bf16 %v1946, %v1944
    %v1985 = vpack.c.bf16 %v1949, %v1947
    %v1986 = vpack.c.bf16 %v1950, %v1948
    %v1987 = vpack.c.bf16 %v1953, %v1951
    %v1988 = vpack.c.bf16 %v1954, %v1952
    %v1989 = vpack.c.bf16 %v1957, %v1955
    %v1990 = vpack.c.bf16 %v1958, %v1956
    %v1991 = vld [vmem:[#allocation7] sm:$0xff]
    %v1992 = vld [vmem:[#allocation7 + $0x8] sm:$0xff]
    %v1993 = vld [vmem:[#allocation7 + $0x10] sm:$0xff]
    %v1994 = vld [vmem:[#allocation7 + $0x18] sm:$0xff]
    %v1995 = vld [vmem:[#allocation7 + $0x20] sm:$0xff]
    %v1996 = vld [vmem:[#allocation7 + $0x28] sm:$0xff]
    %v1997 = vld [vmem:[#allocation7 + $0x30] sm:$0xff]
    %v1998 = vld [vmem:[#allocation7 + $0x38] sm:$0xff]
    %v1999 = vld [vmem:[#allocation7 + $0x40] sm:$0xff]
    %v2000 = vld [vmem:[#allocation7 + $0x48] sm:$0xff]
    %v2001 = vld [vmem:[#allocation7 + $0x50] sm:$0xff]
    %v2002 = vld [vmem:[#allocation7 + $0x58] sm:$0xff]
    %v2003 = vld [vmem:[#allocation7 + $0x60] sm:$0xff]
    %v2004 = vld [vmem:[#allocation7 + $0x68] sm:$0xff]
    %v2005 = vld [vmem:[#allocation7 + $0x70] sm:$0xff]
    %v2006 = vld [vmem:[#allocation7 + $0x78] sm:$0xff]
    %v2007 = vld [vmem:[#allocation7 + $0x80] sm:$0xff]
    %v2008 = vld [vmem:[#allocation7 + $0x88] sm:$0xff]
    %v2009 = vld [vmem:[#allocation7 + $0x90] sm:$0xff]
    %v2010 = vld [vmem:[#allocation7 + $0x98] sm:$0xff]
    %v2011 = vld [vmem:[#allocation7 + $0xa0] sm:$0xff]
    %v2012 = vld [vmem:[#allocation7 + $0xa8] sm:$0xff]
    %v2013 = vld [vmem:[#allocation7 + $0xb0] sm:$0xff]
    %v2014 = vld [vmem:[#allocation7 + $0xb8] sm:$0xff]
    %v2015 = vld [vmem:[#allocation7 + $0xc0] sm:$0xff]
    %v2016 = vld [vmem:[#allocation7 + $0xc8] sm:$0xff]
    %v2017 = vld [vmem:[#allocation7 + $0xd0] sm:$0xff]
    %v2018 = vld [vmem:[#allocation7 + $0xd8] sm:$0xff]
    %v2019 = vld [vmem:[#allocation7 + $0xe0] sm:$0xff]
    %v2020 = vld [vmem:[#allocation7 + $0xe8] sm:$0xff]
    %v2021 = vld [vmem:[#allocation7 + $0xf0] sm:$0xff]
    %v2022 = vld [vmem:[#allocation7 + $0xf8] sm:$0xff]
    %v2023 = vld [vmem:[%s10] sm:$0x3]
    %v2025 = vlaneseq
    %v2026 = vshrl.u32 %v2025, 7
    %v2027 = vsub.s32 0, %v2026
    %v2028 = vrot.slane %v2023, %v2027
    %v2029 = vlaneseq
    %v2030 = vshrl.u32 %v2029, 7
    %v2031 = vsub.s32 1, %v2030
    %v2032 = vrot.slane %v2023, %v2031
    %v2067 = vunpack.c.l.b16 %v1991
    %v2068 = vunpack.c.h.b16 %v1991
    %v2069 = vunpack.c.l.b16 %v1992
    %v2070 = vunpack.c.h.b16 %v1992
    %v2071 = vunpack.c.l.b16 %v1993
    %v2072 = vunpack.c.h.b16 %v1993
    %v2073 = vunpack.c.l.b16 %v1994
    %v2074 = vunpack.c.h.b16 %v1994
    %v2075 = vunpack.c.l.b16 %v1995
    %v2076 = vunpack.c.h.b16 %v1995
    %v2077 = vunpack.c.l.b16 %v1996
    %v2078 = vunpack.c.h.b16 %v1996
    %v2079 = vunpack.c.l.b16 %v1997
    %v2080 = vunpack.c.h.b16 %v1997
    %v2081 = vunpack.c.l.b16 %v1998
    %v2082 = vunpack.c.h.b16 %v1998
    %v2083 = vunpack.c.l.b16 %v1999
    %v2084 = vunpack.c.h.b16 %v1999
    %v2085 = vunpack.c.l.b16 %v2000
    %v2086 = vunpack.c.h.b16 %v2000
    %v2087 = vunpack.c.l.b16 %v2001
    %v2088 = vunpack.c.h.b16 %v2001
    %v2089 = vunpack.c.l.b16 %v2002
    %v2090 = vunpack.c.h.b16 %v2002
    %v2091 = vunpack.c.l.b16 %v2003
    %v2092 = vunpack.c.h.b16 %v2003
    %v2093 = vunpack.c.l.b16 %v2004
    %v2094 = vunpack.c.h.b16 %v2004
    %v2095 = vunpack.c.l.b16 %v2005
    %v2096 = vunpack.c.h.b16 %v2005
    %v2097 = vunpack.c.l.b16 %v2006
    %v2098 = vunpack.c.h.b16 %v2006
    %v2099 = vunpack.c.l.b16 %v2007
    %v2100 = vunpack.c.h.b16 %v2007
    %v2101 = vunpack.c.l.b16 %v2008
    %v2102 = vunpack.c.h.b16 %v2008
    %v2103 = vunpack.c.l.b16 %v2009
    %v2104 = vunpack.c.h.b16 %v2009
    %v2105 = vunpack.c.l.b16 %v2010
    %v2106 = vunpack.c.h.b16 %v2010
    %v2107 = vunpack.c.l.b16 %v2011
    %v2108 = vunpack.c.h.b16 %v2011
    %v2109 = vunpack.c.l.b16 %v2012
    %v2110 = vunpack.c.h.b16 %v2012
    %v2111 = vunpack.c.l.b16 %v2013
    %v2112 = vunpack.c.h.b16 %v2013
    %v2113 = vunpack.c.l.b16 %v2014
    %v2114 = vunpack.c.h.b16 %v2014
    %v2115 = vunpack.c.l.b16 %v2015
    %v2116 = vunpack.c.h.b16 %v2015
    %v2117 = vunpack.c.l.b16 %v2016
    %v2118 = vunpack.c.h.b16 %v2016
    %v2119 = vunpack.c.l.b16 %v2017
    %v2120 = vunpack.c.h.b16 %v2017
    %v2121 = vunpack.c.l.b16 %v2018
    %v2122 = vunpack.c.h.b16 %v2018
    %v2123 = vunpack.c.l.b16 %v2019
    %v2124 = vunpack.c.h.b16 %v2019
    %v2125 = vunpack.c.l.b16 %v2020
    %v2126 = vunpack.c.h.b16 %v2020
    %v2127 = vunpack.c.l.b16 %v2021
    %v2128 = vunpack.c.h.b16 %v2021
    %v2129 = vunpack.c.l.b16 %v2022
    %v2130 = vunpack.c.h.b16 %v2022
    %v2131 = vpack.c.b16 %v2069, %v2067
    %v2132 = vpack.c.b16 %v2070, %v2068
    %v2133 = vpack.c.b16 %v2073, %v2071
    %v2134 = vpack.c.b16 %v2074, %v2072
    %v2135 = vpack.c.b16 %v2077, %v2075
    %v2136 = vpack.c.b16 %v2078, %v2076
    %v2137 = vpack.c.b16 %v2081, %v2079
    %v2138 = vpack.c.b16 %v2082, %v2080
    %v2139 = vpack.c.b16 %v2085, %v2083
    %v2140 = vpack.c.b16 %v2086, %v2084
    %v2141 = vpack.c.b16 %v2089, %v2087
    %v2142 = vpack.c.b16 %v2090, %v2088
    %v2143 = vpack.c.b16 %v2093, %v2091
    %v2144 = vpack.c.b16 %v2094, %v2092
    %v2145 = vpack.c.b16 %v2097, %v2095
    %v2146 = vpack.c.b16 %v2098, %v2096
    %v2147 = vpack.c.b16 %v2101, %v2099
    %v2148 = vpack.c.b16 %v2102, %v2100
    %v2149 = vpack.c.b16 %v2105, %v2103
    %v2150 = vpack.c.b16 %v2106, %v2104
    %v2151 = vpack.c.b16 %v2109, %v2107
    %v2152 = vpack.c.b16 %v2110, %v2108
    %v2153 = vpack.c.b16 %v2113, %v2111
    %v2154 = vpack.c.b16 %v2114, %v2112
    %v2155 = vpack.c.b16 %v2117, %v2115
    %v2156 = vpack.c.b16 %v2118, %v2116
    %v2157 = vpack.c.b16 %v2121, %v2119
    %v2158 = vpack.c.b16 %v2122, %v2120
    %v2159 = vpack.c.b16 %v2125, %v2123
    %v2160 = vpack.c.b16 %v2126, %v2124
    %v2161 = vpack.c.b16 %v2129, %v2127
    %v2162 = vpack.c.b16 %v2130, %v2128
    %2195 = vmatprep.subr.bf16.mxu0 %v2146
    %2196 = vmatpush1.bf16.msra.mxu0 %v2145
    %2197 = vmatprep.subr.bf16.mxu0 %v2144
    %2198 = vmatpush1.bf16.msra.mxu0 %v2143
    %2199 = vmatprep.subr.bf16.mxu0 %v2142
    %2200 = vmatpush1.bf16.msra.mxu0 %v2141
    %2201 = vmatprep.subr.bf16.mxu0 %v2140
    %2202 = vmatpush1.bf16.msra.mxu0 %v2139
    %2203 = vmatprep.subr.bf16.mxu0 %v2138
    %2204 = vmatpush1.bf16.msra.mxu0 %v2137
    %2205 = vmatprep.subr.bf16.mxu0 %v2136
    %2206 = vmatpush1.bf16.msra.mxu0 %v2135
    %2207 = vmatprep.subr.bf16.mxu0 %v2134
    %2208 = vmatpush1.bf16.msra.mxu0 %v2133
    %2209 = vmatprep.subr.bf16.mxu0 %v2132
    %2210 = vmatpush1.bf16.msra.mxu0 %v2131
    %2211 = vmatprep.subr.bf16.mxu0 %v2162
    %2212 = vmatpush2.bf16.msra.mxu0 %v2161
    %2213 = vmatprep.subr.bf16.mxu0 %v2160
    %2214 = vmatpush2.bf16.msra.mxu0 %v2159
    %2215 = vmatprep.subr.bf16.mxu0 %v2158
    %2216 = vmatpush2.bf16.msra.mxu0 %v2157
    %2217 = vmatprep.subr.bf16.mxu0 %v2156
    %2218 = vmatpush2.bf16.msra.mxu0 %v2155
    %2219 = vmatprep.subr.bf16.mxu0 %v2154
    %2220 = vmatpush2.bf16.msra.mxu0 %v2153
    %2221 = vmatprep.subr.bf16.mxu0 %v2152
    %2222 = vmatpush2.bf16.msra.mxu0 %v2151
    %2223 = vmatprep.subr.bf16.mxu0 %v2150
    %2224 = vmatpush2.bf16.msra.mxu0 %v2149
    %2225 = vmatprep.subr.bf16.mxu0 %v2148
    %2226 = vmatpush2.bf16.msra.mxu0 %v2147
    %2227 = vmatprep.mubr.bf16.mxu0 %v1960
    %2228 = vmatmul.mubr.bf16.gmra.mxu0 %v1959
    %v2229 = vpop.f32.mrf.mxu0
    %v2230 = vadd.f32 %v2028, %v2229
    %v2231 = vpop.f32.mrf.mxu0
    %v2232 = vadd.f32 %v2032, %v2231
    %v2233 = vpop.f32.mrf.mxu0
    %v2234 = vadd.f32 %v2028, %v2233
    %v2235 = vpop.f32.mrf.mxu0
    %v2236 = vadd.f32 %v2032, %v2235
    %2237 = vmatprep.mubr.bf16.mxu0 %v1962
    %2238 = vmatmul.mubr.bf16.gmra.mxu0 %v1961
    %v2239 = vpop.f32.mrf.mxu0
    %v2240 = vadd.f32 %v2028, %v2239
    %v2241 = vpop.f32.mrf.mxu0
    %v2242 = vadd.f32 %v2032, %v2241
    %v2243 = vpop.f32.mrf.mxu0
    %v2244 = vadd.f32 %v2028, %v2243
    %v2245 = vpop.f32.mrf.mxu0
    %v2246 = vadd.f32 %v2032, %v2245
    %2247 = vmatprep.mubr.bf16.mxu0 %v1964
    %2248 = vmatmul.mubr.bf16.gmra.mxu0 %v1963
    %v2249 = vpop.f32.mrf.mxu0
    %v2250 = vadd.f32 %v2028, %v2249
    %v2251 = vpop.f32.mrf.mxu0
    %v2252 = vadd.f32 %v2032, %v2251
    %v2253 = vpop.f32.mrf.mxu0
    %v2254 = vadd.f32 %v2028, %v2253
    %v2255 = vpop.f32.mrf.mxu0
    %v2256 = vadd.f32 %v2032, %v2255
    %2257 = vmatprep.mubr.bf16.mxu0 %v1966
    %2258 = vmatmul.mubr.bf16.gmra.mxu0 %v1965
    %v2259 = vpop.f32.mrf.mxu0
    %v2260 = vadd.f32 %v2028, %v2259
    %v2261 = vpop.f32.mrf.mxu0
    %v2262 = vadd.f32 %v2032, %v2261
    %v2263 = vpop.f32.mrf.mxu0
    %v2264 = vadd.f32 %v2028, %v2263
    %v2265 = vpop.f32.mrf.mxu0
    %v2266 = vadd.f32 %v2032, %v2265
    %2267 = vmatprep.mubr.bf16.mxu0 %v1968
    %2268 = vmatmul.mubr.bf16.gmra.mxu0 %v1967
    %v2269 = vpop.f32.mrf.mxu0
    %v2270 = vadd.f32 %v2028, %v2269
    %v2271 = vpop.f32.mrf.mxu0
    %v2272 = vadd.f32 %v2032, %v2271
    %v2273 = vpop.f32.mrf.mxu0
    %v2274 = vadd.f32 %v2028, %v2273
    %v2275 = vpop.f32.mrf.mxu0
    %v2276 = vadd.f32 %v2032, %v2275
    %2277 = vmatprep.mubr.bf16.mxu0 %v1970
    %2278 = vmatmul.mubr.bf16.gmra.mxu0 %v1969
    %v2279 = vpop.f32.mrf.mxu0
    %v2280 = vadd.f32 %v2028, %v2279
    %v2281 = vpop.f32.mrf.mxu0
    %v2282 = vadd.f32 %v2032, %v2281
    %v2283 = vpop.f32.mrf.mxu0
    %v2284 = vadd.f32 %v2028, %v2283
    %v2285 = vpop.f32.mrf.mxu0
    %v2286 = vadd.f32 %v2032, %v2285
    %2287 = vmatprep.mubr.bf16.mxu0 %v1972
    %2288 = vmatmul.mubr.bf16.gmra.mxu0 %v1971
    %v2289 = vpop.f32.mrf.mxu0
    %v2290 = vadd.f32 %v2028, %v2289
    %v2291 = vpop.f32.mrf.mxu0
    %v2292 = vadd.f32 %v2032, %v2291
    %v2293 = vpop.f32.mrf.mxu0
    %v2294 = vadd.f32 %v2028, %v2293
    %v2295 = vpop.f32.mrf.mxu0
    %v2296 = vadd.f32 %v2032, %v2295
    %2297 = vmatprep.mubr.bf16.mxu0 %v1974
    %2298 = vmatmul.mubr.bf16.gmra.mxu0 %v1973
    %v2299 = vpop.f32.mrf.mxu0
    %v2300 = vadd.f32 %v2028, %v2299
    %v2301 = vpop.f32.mrf.mxu0
    %v2302 = vadd.f32 %v2032, %v2301
    %v2303 = vpop.f32.mrf.mxu0
    %v2304 = vadd.f32 %v2028, %v2303
    %v2305 = vpop.f32.mrf.mxu0
    %v2306 = vadd.f32 %v2032, %v2305
    %2307 = vmatprep.mubr.bf16.mxu0 %v1976
    %2308 = vmatmul.mubr.bf16.gmra.mxu0 %v1975
    %v2309 = vpop.f32.mrf.mxu0
    %v2310 = vadd.f32 %v2028, %v2309
    %v2311 = vpop.f32.mrf.mxu0
    %v2312 = vadd.f32 %v2032, %v2311
    %v2313 = vpop.f32.mrf.mxu0
    %v2314 = vadd.f32 %v2028, %v2313
    %v2315 = vpop.f32.mrf.mxu0
    %v2316 = vadd.f32 %v2032, %v2315
    %2317 = vmatprep.mubr.bf16.mxu0 %v1978
    %2318 = vmatmul.mubr.bf16.gmra.mxu0 %v1977
    %v2319 = vpop.f32.mrf.mxu0
    %v2320 = vadd.f32 %v2028, %v2319
    %v2321 = vpop.f32.mrf.mxu0
    %v2322 = vadd.f32 %v2032, %v2321
    %v2323 = vpop.f32.mrf.mxu0
    %v2324 = vadd.f32 %v2028, %v2323
    %v2325 = vpop.f32.mrf.mxu0
    %v2326 = vadd.f32 %v2032, %v2325
    %2327 = vmatprep.mubr.bf16.mxu0 %v1980
    %2328 = vmatmul.mubr.bf16.gmra.mxu0 %v1979
    %v2329 = vpop.f32.mrf.mxu0
    %v2330 = vadd.f32 %v2028, %v2329
    %v2331 = vpop.f32.mrf.mxu0
    %v2332 = vadd.f32 %v2032, %v2331
    %v2333 = vpop.f32.mrf.mxu0
    %v2334 = vadd.f32 %v2028, %v2333
    %v2335 = vpop.f32.mrf.mxu0
    %v2336 = vadd.f32 %v2032, %v2335
    %2337 = vmatprep.mubr.bf16.mxu0 %v1982
    %2338 = vmatmul.mubr.bf16.gmra.mxu0 %v1981
    %v2339 = vpop.f32.mrf.mxu0
    %v2340 = vadd.f32 %v2028, %v2339
    %v2341 = vpop.f32.mrf.mxu0
    %v2342 = vadd.f32 %v2032, %v2341
    %v2343 = vpop.f32.mrf.mxu0
    %v2344 = vadd.f32 %v2028, %v2343
    %v2345 = vpop.f32.mrf.mxu0
    %v2346 = vadd.f32 %v2032, %v2345
    %2347 = vmatprep.mubr.bf16.mxu0 %v1984
    %2348 = vmatmul.mubr.bf16.gmra.mxu0 %v1983
    %v2349 = vpop.f32.mrf.mxu0
    %v2350 = vadd.f32 %v2028, %v2349
    %v2351 = vpop.f32.mrf.mxu0
    %v2352 = vadd.f32 %v2032, %v2351
    %v2353 = vpop.f32.mrf.mxu0
    %v2354 = vadd.f32 %v2028, %v2353
    %v2355 = vpop.f32.mrf.mxu0
    %v2356 = vadd.f32 %v2032, %v2355
    %2357 = vmatprep.mubr.bf16.mxu0 %v1986
    %2358 = vmatmul.mubr.bf16.gmra.mxu0 %v1985
    %v2359 = vpop.f32.mrf.mxu0
    %v2360 = vadd.f32 %v2028, %v2359
    %v2361 = vpop.f32.mrf.mxu0
    %v2362 = vadd.f32 %v2032, %v2361
    %v2363 = vpop.f32.mrf.mxu0
    %v2364 = vadd.f32 %v2028, %v2363
    %v2365 = vpop.f32.mrf.mxu0
    %v2366 = vadd.f32 %v2032, %v2365
    %2367 = vmatprep.mubr.bf16.mxu0 %v1988
    %2368 = vmatmul.mubr.bf16.gmra.mxu0 %v1987
    %v2369 = vpop.f32.mrf.mxu0
    %v2370 = vadd.f32 %v2028, %v2369
    %v2371 = vpop.f32.mrf.mxu0
    %v2372 = vadd.f32 %v2032, %v2371
    %v2373 = vpop.f32.mrf.mxu0
    %v2374 = vadd.f32 %v2028, %v2373
    %v2375 = vpop.f32.mrf.mxu0
    %v2376 = vadd.f32 %v2032, %v2375
    %2377 = vmatprep.mubr.bf16.mxu0 %v1990
    %2378 = vmatmul.mubr.bf16.gmra.mxu0 %v1989
    %v2379 = vpop.f32.mrf.mxu0
    %v2380 = vadd.f32 %v2028, %v2379
    %v2381 = vpop.f32.mrf.mxu0
    %v2382 = vadd.f32 %v2032, %v2381
    %v2383 = vpop.f32.mrf.mxu0
    %v2384 = vadd.f32 %v2028, %v2383
    %v2385 = vpop.f32.mrf.mxu0
    %v2386 = vadd.f32 %v2032, %v2385
    %2387 = vdwg.mxu0
    %v2388 = vmax.f32 %v2230, 0.0
    %v2389 = vmax.f32 %v2232, 0.0
    %v2390 = vmax.f32 %v2234, 0.0
    %v2391 = vmax.f32 %v2236, 0.0
    %v2392 = vmax.f32 %v2240, 0.0
    %v2393 = vmax.f32 %v2242, 0.0
    %v2394 = vmax.f32 %v2244, 0.0
    %v2395 = vmax.f32 %v2246, 0.0
    %v2396 = vmax.f32 %v2250, 0.0
    %v2397 = vmax.f32 %v2252, 0.0
    %v2398 = vmax.f32 %v2254, 0.0
    %v2399 = vmax.f32 %v2256, 0.0
    %v2400 = vmax.f32 %v2260, 0.0
    %v2401 = vmax.f32 %v2262, 0.0
    %v2402 = vmax.f32 %v2264, 0.0
    %v2403 = vmax.f32 %v2266, 0.0
    %v2404 = vmax.f32 %v2270, 0.0
    %v2405 = vmax.f32 %v2272, 0.0
    %v2406 = vmax.f32 %v2274, 0.0
    %v2407 = vmax.f32 %v2276, 0.0
    %v2408 = vmax.f32 %v2280, 0.0
    %v2409 = vmax.f32 %v2282, 0.0
    %v2410 = vmax.f32 %v2284, 0.0
    %v2411 = vmax.f32 %v2286, 0.0
    %v2412 = vmax.f32 %v2290, 0.0
    %v2413 = vmax.f32 %v2292, 0.0
    %v2414 = vmax.f32 %v2294, 0.0
    %v2415 = vmax.f32 %v2296, 0.0
    %v2416 = vmax.f32 %v2300, 0.0
    %v2417 = vmax.f32 %v2302, 0.0
    %v2418 = vmax.f32 %v2304, 0.0
    %v2419 = vmax.f32 %v2306, 0.0
    %v2420 = vmax.f32 %v2310, 0.0
    %v2421 = vmax.f32 %v2312, 0.0
    %v2422 = vmax.f32 %v2314, 0.0
    %v2423 = vmax.f32 %v2316, 0.0
    %v2424 = vmax.f32 %v2320, 0.0
    %v2425 = vmax.f32 %v2322, 0.0
    %v2426 = vmax.f32 %v2324, 0.0
    %v2427 = vmax.f32 %v2326, 0.0
    %v2428 = vmax.f32 %v2330, 0.0
    %v2429 = vmax.f32 %v2332, 0.0
    %v2430 = vmax.f32 %v2334, 0.0
    %v2431 = vmax.f32 %v2336, 0.0
    %v2432 = vmax.f32 %v2340, 0.0
    %v2433 = vmax.f32 %v2342, 0.0
    %v2434 = vmax.f32 %v2344, 0.0
    %v2435 = vmax.f32 %v2346, 0.0
    %v2436 = vmax.f32 %v2350, 0.0
    %v2437 = vmax.f32 %v2352, 0.0
    %v2438 = vmax.f32 %v2354, 0.0
    %v2439 = vmax.f32 %v2356, 0.0
    %v2440 = vmax.f32 %v2360, 0.0
    %v2441 = vmax.f32 %v2362, 0.0
    %v2442 = vmax.f32 %v2364, 0.0
    %v2443 = vmax.f32 %v2366, 0.0
    %v2444 = vmax.f32 %v2370, 0.0
    %v2445 = vmax.f32 %v2372, 0.0
    %v2446 = vmax.f32 %v2374, 0.0
    %v2447 = vmax.f32 %v2376, 0.0
    %v2448 = vmax.f32 %v2380, 0.0
    %v2449 = vmax.f32 %v2382, 0.0
    %v2450 = vmax.f32 %v2384, 0.0
    %v2451 = vmax.f32 %v2386, 0.0
    %v2452 = vpack.c.bf16 %v2390, %v2388
    %v2453 = vpack.c.bf16 %v2391, %v2389
    %v2454 = vpack.c.bf16 %v2394, %v2392
    %v2455 = vpack.c.bf16 %v2395, %v2393
    %v2456 = vpack.c.bf16 %v2398, %v2396
    %v2457 = vpack.c.bf16 %v2399, %v2397
    %v2458 = vpack.c.bf16 %v2402, %v2400
    %v2459 = vpack.c.bf16 %v2403, %v2401
    %v2460 = vpack.c.bf16 %v2406, %v2404
    %v2461 = vpack.c.bf16 %v2407, %v2405
    %v2462 = vpack.c.bf16 %v2410, %v2408
    %v2463 = vpack.c.bf16 %v2411, %v2409
    %v2464 = vpack.c.bf16 %v2414, %v2412
    %v2465 = vpack.c.bf16 %v2415, %v2413
    %v2466 = vpack.c.bf16 %v2418, %v2416
    %v2467 = vpack.c.bf16 %v2419, %v2417
    %v2468 = vpack.c.bf16 %v2422, %v2420
    %v2469 = vpack.c.bf16 %v2423, %v2421
    %v2470 = vpack.c.bf16 %v2426, %v2424
    %v2471 = vpack.c.bf16 %v2427, %v2425
    %v2472 = vpack.c.bf16 %v2430, %v2428
    %v2473 = vpack.c.bf16 %v2431, %v2429
    %v2474 = vpack.c.bf16 %v2434, %v2432
    %v2475 = vpack.c.bf16 %v2435, %v2433
    %v2476 = vpack.c.bf16 %v2438, %v2436
    %v2477 = vpack.c.bf16 %v2439, %v2437
    %v2478 = vpack.c.bf16 %v2442, %v2440
    %v2479 = vpack.c.bf16 %v2443, %v2441
    %v2480 = vpack.c.bf16 %v2446, %v2444
    %v2481 = vpack.c.bf16 %v2447, %v2445
    %v2482 = vpack.c.bf16 %v2450, %v2448
    %v2483 = vpack.c.bf16 %v2451, %v2449
    %v2484 = vld [vmem:[#allocation8] sm:$0xf]
    %v2485 = vld [vmem:[#allocation8 + $0x4] sm:$0xf]
    %v2486 = vld [vmem:[#allocation8 + $0x8] sm:$0xf]
    %v2487 = vld [vmem:[#allocation8 + $0xc] sm:$0xf]
    %v2488 = vld [vmem:[#allocation8 + $0x10] sm:$0xf]
    %v2489 = vld [vmem:[#allocation8 + $0x14] sm:$0xf]
    %v2490 = vld [vmem:[#allocation8 + $0x18] sm:$0xf]
    %v2491 = vld [vmem:[#allocation8 + $0x1c] sm:$0xf]
    %v2492 = vld [vmem:[#allocation8 + $0x20] sm:$0xf]
    %v2493 = vld [vmem:[#allocation8 + $0x24] sm:$0xf]
    %v2494 = vld [vmem:[#allocation8 + $0x28] sm:$0xf]
    %v2495 = vld [vmem:[#allocation8 + $0x2c] sm:$0xf]
    %v2496 = vld [vmem:[#allocation8 + $0x30] sm:$0xf]
    %v2497 = vld [vmem:[#allocation8 + $0x34] sm:$0xf]
    %v2498 = vld [vmem:[#allocation8 + $0x38] sm:$0xf]
    %v2499 = vld [vmem:[#allocation8 + $0x3c] sm:$0xf]
    %v2500 = vld [vmem:[#allocation8 + $0x40] sm:$0xf]
    %v2501 = vld [vmem:[#allocation8 + $0x44] sm:$0xf]
    %v2502 = vld [vmem:[#allocation8 + $0x48] sm:$0xf]
    %v2503 = vld [vmem:[#allocation8 + $0x4c] sm:$0xf]
    %v2504 = vld [vmem:[#allocation8 + $0x50] sm:$0xf]
    %v2505 = vld [vmem:[#allocation8 + $0x54] sm:$0xf]
    %v2506 = vld [vmem:[#allocation8 + $0x58] sm:$0xf]
    %v2507 = vld [vmem:[#allocation8 + $0x5c] sm:$0xf]
    %v2508 = vld [vmem:[#allocation8 + $0x60] sm:$0xf]
    %v2509 = vld [vmem:[#allocation8 + $0x64] sm:$0xf]
    %v2510 = vld [vmem:[#allocation8 + $0x68] sm:$0xf]
    %v2511 = vld [vmem:[#allocation8 + $0x6c] sm:$0xf]
    %v2512 = vld [vmem:[#allocation8 + $0x70] sm:$0xf]
    %v2513 = vld [vmem:[#allocation8 + $0x74] sm:$0xf]
    %v2514 = vld [vmem:[#allocation8 + $0x78] sm:$0xf]
    %v2515 = vld [vmem:[#allocation8 + $0x7c] sm:$0xf]
    %v2516 = vld [vmem:[%s12] sm:$0x1]
    %v2518 = vlaneseq
    %v2519 = vshrl.u32 %v2518, 7
    %v2520 = vsub.s32 0, %v2519
    %v2521 = vrot.slane %v2516, %v2520
    %v2555 = vunpack.c.l.b16 %v2484
    %v2556 = vunpack.c.l.b16 %v2485
    %v2557 = vunpack.c.l.b16 %v2486
    %v2558 = vunpack.c.l.b16 %v2487
    %v2559 = vunpack.c.l.b16 %v2488
    %v2560 = vunpack.c.l.b16 %v2489
    %v2561 = vunpack.c.l.b16 %v2490
    %v2562 = vunpack.c.l.b16 %v2491
    %v2563 = vunpack.c.l.b16 %v2492
    %v2564 = vunpack.c.l.b16 %v2493
    %v2565 = vunpack.c.l.b16 %v2494
    %v2566 = vunpack.c.l.b16 %v2495
    %v2567 = vunpack.c.l.b16 %v2496
    %v2568 = vunpack.c.l.b16 %v2497
    %v2569 = vunpack.c.l.b16 %v2498
    %v2570 = vunpack.c.l.b16 %v2499
    %v2571 = vunpack.c.l.b16 %v2500
    %v2572 = vunpack.c.l.b16 %v2501
    %v2573 = vunpack.c.l.b16 %v2502
    %v2574 = vunpack.c.l.b16 %v2503
    %v2575 = vunpack.c.l.b16 %v2504
    %v2576 = vunpack.c.l.b16 %v2505
    %v2577 = vunpack.c.l.b16 %v2506
    %v2578 = vunpack.c.l.b16 %v2507
    %v2579 = vunpack.c.l.b16 %v2508
    %v2580 = vunpack.c.l.b16 %v2509
    %v2581 = vunpack.c.l.b16 %v2510
    %v2582 = vunpack.c.l.b16 %v2511
    %v2583 = vunpack.c.l.b16 %v2512
    %v2584 = vunpack.c.l.b16 %v2513
    %v2585 = vunpack.c.l.b16 %v2514
    %v2586 = vunpack.c.l.b16 %v2515
    %v2587 = vpack.c.b16 %v2556, %v2555
    %v2588 = vpack.c.b16 %v2558, %v2557
    %v2589 = vpack.c.b16 %v2560, %v2559
    %v2590 = vpack.c.b16 %v2562, %v2561
    %v2591 = vpack.c.b16 %v2564, %v2563
    %v2592 = vpack.c.b16 %v2566, %v2565
    %v2593 = vpack.c.b16 %v2568, %v2567
    %v2594 = vpack.c.b16 %v2570, %v2569
    %v2595 = vpack.c.b16 %v2572, %v2571
    %v2596 = vpack.c.b16 %v2574, %v2573
    %v2597 = vpack.c.b16 %v2576, %v2575
    %v2598 = vpack.c.b16 %v2578, %v2577
    %v2599 = vpack.c.b16 %v2580, %v2579
    %v2600 = vpack.c.b16 %v2582, %v2581
    %v2601 = vpack.c.b16 %v2584, %v2583
    %v2602 = vpack.c.b16 %v2586, %v2585
    %2619 = vmatprep.subr.bf16.mxu0 0
    %2620 = vmatpush1.bf16.msra.mxu0 %v2594
    %2621 = vmatprep.subr.bf16.mxu0 0
    %2622 = vmatpush1.bf16.msra.mxu0 %v2593
    %2623 = vmatprep.subr.bf16.mxu0 0
    %2624 = vmatpush1.bf16.msra.mxu0 %v2592
    %2625 = vmatprep.subr.bf16.mxu0 0
    %2626 = vmatpush1.bf16.msra.mxu0 %v2591
    %2627 = vmatprep.subr.bf16.mxu0 0
    %2628 = vmatpush1.bf16.msra.mxu0 %v2590
    %2629 = vmatprep.subr.bf16.mxu0 0
    %2630 = vmatpush1.bf16.msra.mxu0 %v2589
    %2631 = vmatprep.subr.bf16.mxu0 0
    %2632 = vmatpush1.bf16.msra.mxu0 %v2588
    %2633 = vmatprep.subr.bf16.mxu0 0
    %2634 = vmatpush1.bf16.msra.mxu0 %v2587
    %2635 = vmatprep.subr.bf16.mxu0 0
    %2636 = vmatpush2.bf16.msra.mxu0 %v2602
    %2637 = vmatprep.subr.bf16.mxu0 0
    %2638 = vmatpush2.bf16.msra.mxu0 %v2601
    %2639 = vmatprep.subr.bf16.mxu0 0
    %2640 = vmatpush2.bf16.msra.mxu0 %v2600
    %2641 = vmatprep.subr.bf16.mxu0 0
    %2642 = vmatpush2.bf16.msra.mxu0 %v2599
    %2643 = vmatprep.subr.bf16.mxu0 0
    %2644 = vmatpush2.bf16.msra.mxu0 %v2598
    %2645 = vmatprep.subr.bf16.mxu0 0
    %2646 = vmatpush2.bf16.msra.mxu0 %v2597
    %2647 = vmatprep.subr.bf16.mxu0 0
    %2648 = vmatpush2.bf16.msra.mxu0 %v2596
    %2649 = vmatprep.subr.bf16.mxu0 0
    %2650 = vmatpush2.bf16.msra.mxu0 %v2595
    %2651 = vmatprep.mubr.bf16.mxu0 %v2453
    %2652 = vmatmul.mubr.bf16.gmra.mxu0 %v2452
    %v2653 = vpop.f32.mrf.mxu0
    %v2654 = vadd.f32 %v2521, %v2653
    %v2655 = vpop.f32.mrf.mxu0
    %v2656 = vpop.f32.mrf.mxu0
    %v2657 = vadd.f32 %v2521, %v2656
    %v2658 = vpop.f32.mrf.mxu0
    %2659 = vmatprep.mubr.bf16.mxu0 %v2455
    %2660 = vmatmul.mubr.bf16.gmra.mxu0 %v2454
    %v2661 = vpop.f32.mrf.mxu0
    %v2662 = vadd.f32 %v2521, %v2661
    %v2663 = vpop.f32.mrf.mxu0
    %v2664 = vpop.f32.mrf.mxu0
    %v2665 = vadd.f32 %v2521, %v2664
    %v2666 = vpop.f32.mrf.mxu0
    %2667 = vmatprep.mubr.bf16.mxu0 %v2457
    %2668 = vmatmul.mubr.bf16.gmra.mxu0 %v2456
    %v2669 = vpop.f32.mrf.mxu0
    %v2670 = vadd.f32 %v2521, %v2669
    %v2671 = vpop.f32.mrf.mxu0
    %v2672 = vpop.f32.mrf.mxu0
    %v2673 = vadd.f32 %v2521, %v2672
    %v2674 = vpop.f32.mrf.mxu0
    %2675 = vmatprep.mubr.bf16.mxu0 %v2459
    %2676 = vmatmul.mubr.bf16.gmra.mxu0 %v2458
    %v2677 = vpop.f32.mrf.mxu0
    %v2678 = vadd.f32 %v2521, %v2677
    %v2679 = vpop.f32.mrf.mxu0
    %v2680 = vpop.f32.mrf.mxu0
    %v2681 = vadd.f32 %v2521, %v2680
    %v2682 = vpop.f32.mrf.mxu0
    %2683 = vmatprep.mubr.bf16.mxu0 %v2461
    %2684 = vmatmul.mubr.bf16.gmra.mxu0 %v2460
    %v2685 = vpop.f32.mrf.mxu0
    %v2686 = vadd.f32 %v2521, %v2685
    %v2687 = vpop.f32.mrf.mxu0
    %v2688 = vpop.f32.mrf.mxu0
    %v2689 = vadd.f32 %v2521, %v2688
    %v2690 = vpop.f32.mrf.mxu0
    %2691 = vmatprep.mubr.bf16.mxu0 %v2463
    %2692 = vmatmul.mubr.bf16.gmra.mxu0 %v2462
    %v2693 = vpop.f32.mrf.mxu0
    %v2694 = vadd.f32 %v2521, %v2693
    %v2695 = vpop.f32.mrf.mxu0
    %v2696 = vpop.f32.mrf.mxu0
    %v2697 = vadd.f32 %v2521, %v2696
    %v2698 = vpop.f32.mrf.mxu0
    %2699 = vmatprep.mubr.bf16.mxu0 %v2465
    %2700 = vmatmul.mubr.bf16.gmra.mxu0 %v2464
    %v2701 = vpop.f32.mrf.mxu0
    %v2702 = vadd.f32 %v2521, %v2701
    %v2703 = vpop.f32.mrf.mxu0
    %v2704 = vpop.f32.mrf.mxu0
    %v2705 = vadd.f32 %v2521, %v2704
    %v2706 = vpop.f32.mrf.mxu0
    %2707 = vmatprep.mubr.bf16.mxu0 %v2467
    %2708 = vmatmul.mubr.bf16.gmra.mxu0 %v2466
    %v2709 = vpop.f32.mrf.mxu0
    %v2710 = vadd.f32 %v2521, %v2709
    %v2711 = vpop.f32.mrf.mxu0
    %v2712 = vpop.f32.mrf.mxu0
    %v2713 = vadd.f32 %v2521, %v2712
    %v2714 = vpop.f32.mrf.mxu0
    %2715 = vmatprep.mubr.bf16.mxu0 %v2469
    %2716 = vmatmul.mubr.bf16.gmra.mxu0 %v2468
    %v2717 = vpop.f32.mrf.mxu0
    %v2718 = vadd.f32 %v2521, %v2717
    %v2719 = vpop.f32.mrf.mxu0
    %v2720 = vpop.f32.mrf.mxu0
    %v2721 = vadd.f32 %v2521, %v2720
    %v2722 = vpop.f32.mrf.mxu0
    %2723 = vmatprep.mubr.bf16.mxu0 %v2471
    %2724 = vmatmul.mubr.bf16.gmra.mxu0 %v2470
    %v2725 = vpop.f32.mrf.mxu0
    %v2726 = vadd.f32 %v2521, %v2725
    %v2727 = vpop.f32.mrf.mxu0
    %v2728 = vpop.f32.mrf.mxu0
    %v2729 = vadd.f32 %v2521, %v2728
    %v2730 = vpop.f32.mrf.mxu0
    %2731 = vmatprep.mubr.bf16.mxu0 %v2473
    %2732 = vmatmul.mubr.bf16.gmra.mxu0 %v2472
    %v2733 = vpop.f32.mrf.mxu0
    %v2734 = vadd.f32 %v2521, %v2733
    %v2735 = vpop.f32.mrf.mxu0
    %v2736 = vpop.f32.mrf.mxu0
    %v2737 = vadd.f32 %v2521, %v2736
    %v2738 = vpop.f32.mrf.mxu0
    %2739 = vmatprep.mubr.bf16.mxu0 %v2475
    %2740 = vmatmul.mubr.bf16.gmra.mxu0 %v2474
    %v2741 = vpop.f32.mrf.mxu0
    %v2742 = vadd.f32 %v2521, %v2741
    %v2743 = vpop.f32.mrf.mxu0
    %v2744 = vpop.f32.mrf.mxu0
    %v2745 = vadd.f32 %v2521, %v2744
    %v2746 = vpop.f32.mrf.mxu0
    %2747 = vmatprep.mubr.bf16.mxu0 %v2477
    %2748 = vmatmul.mubr.bf16.gmra.mxu0 %v2476
    %v2749 = vpop.f32.mrf.mxu0
    %v2750 = vadd.f32 %v2521, %v2749
    %v2751 = vpop.f32.mrf.mxu0
    %v2752 = vpop.f32.mrf.mxu0
    %v2753 = vadd.f32 %v2521, %v2752
    %v2754 = vpop.f32.mrf.mxu0
    %2755 = vmatprep.mubr.bf16.mxu0 %v2479
    %2756 = vmatmul.mubr.bf16.gmra.mxu0 %v2478
    %v2757 = vpop.f32.mrf.mxu0
    %v2758 = vadd.f32 %v2521, %v2757
    %v2759 = vpop.f32.mrf.mxu0
    %v2760 = vpop.f32.mrf.mxu0
    %v2761 = vadd.f32 %v2521, %v2760
    %v2762 = vpop.f32.mrf.mxu0
    %2763 = vmatprep.mubr.bf16.mxu0 %v2481
    %2764 = vmatmul.mubr.bf16.gmra.mxu0 %v2480
    %v2765 = vpop.f32.mrf.mxu0
    %v2766 = vadd.f32 %v2521, %v2765
    %v2767 = vpop.f32.mrf.mxu0
    %v2768 = vpop.f32.mrf.mxu0
    %v2769 = vadd.f32 %v2521, %v2768
    %v2770 = vpop.f32.mrf.mxu0
    %2771 = vmatprep.mubr.bf16.mxu0 %v2483
    %2772 = vmatmul.mubr.bf16.gmra.mxu0 %v2482
    %v2773 = vpop.f32.mrf.mxu0
    %v2774 = vadd.f32 %v2521, %v2773
    %v2775 = vpop.f32.mrf.mxu0
    %v2776 = vpop.f32.mrf.mxu0
    %v2777 = vadd.f32 %v2521, %v2776
    %v2778 = vpop.f32.mrf.mxu0
    %2779 = vdwg.mxu0
    %2780 = vst [vmem:[#allocation10] sm:$0xff] %v2654
    %2781 = vst [vmem:[#allocation10 + $0x8] sm:$0xff] %v2657
    %2782 = vst [vmem:[#allocation10 + $0x10] sm:$0xff] %v2662
    %2783 = vst [vmem:[#allocation10 + $0x18] sm:$0xff] %v2665
    %2784 = vst [vmem:[#allocation10 + $0x20] sm:$0xff] %v2670
    %2785 = vst [vmem:[#allocation10 + $0x28] sm:$0xff] %v2673
    %2786 = vst [vmem:[#allocation10 + $0x30] sm:$0xff] %v2678
    %2787 = vst [vmem:[#allocation10 + $0x38] sm:$0xff] %v2681
    %2788 = vst [vmem:[#allocation10 + $0x40] sm:$0xff] %v2686
    %2789 = vst [vmem:[#allocation10 + $0x48] sm:$0xff] %v2689
    %2790 = vst [vmem:[#allocation10 + $0x50] sm:$0xff] %v2694
    %2791 = vst [vmem:[#allocation10 + $0x58] sm:$0xff] %v2697
    %2792 = vst [vmem:[#allocation10 + $0x60] sm:$0xff] %v2702
    %2793 = vst [vmem:[#allocation10 + $0x68] sm:$0xff] %v2705
    %2794 = vst [vmem:[#allocation10 + $0x70] sm:$0xff] %v2710
    %2795 = vst [vmem:[#allocation10 + $0x78] sm:$0xff] %v2713
    %2796 = vst [vmem:[#allocation10 + $0x80] sm:$0xff] %v2718
    %2797 = vst [vmem:[#allocation10 + $0x88] sm:$0xff] %v2721
    %2798 = vst [vmem:[#allocation10 + $0x90] sm:$0xff] %v2726
    %2799 = vst [vmem:[#allocation10 + $0x98] sm:$0xff] %v2729
    %2800 = vst [vmem:[#allocation10 + $0xa0] sm:$0xff] %v2734
    %2801 = vst [vmem:[#allocation10 + $0xa8] sm:$0xff] %v2737
    %2802 = vst [vmem:[#allocation10 + $0xb0] sm:$0xff] %v2742
    %2803 = vst [vmem:[#allocation10 + $0xb8] sm:$0xff] %v2745
    %2804 = vst [vmem:[#allocation10 + $0xc0] sm:$0xff] %v2750
    %2805 = vst [vmem:[#allocation10 + $0xc8] sm:$0xff] %v2753
    %2806 = vst [vmem:[#allocation10 + $0xd0] sm:$0xff] %v2758
    %2807 = vst [vmem:[#allocation10 + $0xd8] sm:$0xff] %v2761
    %2808 = vst [vmem:[#allocation10 + $0xe0] sm:$0xff] %v2766
    %2809 = vst [vmem:[#allocation10 + $0xe8] sm:$0xff] %v2769
    %2810 = vst [vmem:[#allocation10 + $0xf0] sm:$0xff] %v2774
    %2811 = vst [vmem:[#allocation10 + $0xf8] sm:$0xff] %v2777
    // Predicated region
    $region70: #{tpu_custom_call.1} parent=1 // pred_check
      _
    $region71: #{tpu_custom_call.1} parent=1 // pred_check_branch
      %2813 = sbr.rel (0) target = $region73
    $region72: #{tpu_custom_call.1} parent=1 // pred_region
      %s2815 = ssub.s32 4096, 4096
      %2816 = vsyncadd [#allocation4], %s2815
      %s2817 = sshll.u32 [#allocation10], 4
      %s2818 = int_to_ptr.vmem [resolvable:$true] %s2817
      %2823 = dma.vmem_to_hbm [thread:$0]  %s2818, 4096, %s13, [#allocation4], 128, 128, 8
    $region73: #{tpu_custom_call.1} parent=1 // pred_fallthru
      _
    // Predicated region
    $region74: #{tpu_custom_call.1} parent=1 // pred_check
      _
    $region75: #{tpu_custom_call.1} parent=1 // pred_check_branch
      %2825 = sbr.rel (0) target = $region77
    $region76: #{tpu_custom_call.1} parent=1 // pred_region
      %2826 = dma.done [#allocation4], 4096
    $region77: #{tpu_custom_call.1} parent=1 // pred_fallthru
      _
    %2827 = vsyncpa [#allocation3], 1
    %2828 = vsyncpa [#allocation6], 1
    %2829 = vsyncpa [#allocation9], 1
    %2830 = vsyncpa [#allocation4], 1

</llo_original>
